<compile_context>
chip_gen: v5e
topology: v5e:2x2
jax: 0.10.0
libtpu: 0.0.40
codegen_flags: <defaults>
</compile_context>

<pallas_src>
import jax
import jax.numpy as jnp
from jax.experimental import pallas as pl
from jax.experimental.pallas import tpu as pltpu

# Original torch layer dims (fc1..fc7): in -> out
LAYER_DIMS = [320, 512, 512, 256, 128, 128, 64, 16]
NUM_LAYERS = len(LAYER_DIMS) - 1  # 7


def _round_up(n, m):
    return ((n + m - 1) // m) * m


# Lane-padded dims: every hidden/output width rounded up to a multiple of 128 so
# all matmuls and the output store are lane-dense. Zero padding keeps the math exact.
PAD_DIMS = [LAYER_DIMS[0]] + [_round_up(d, 128) for d in LAYER_DIMS[1:]]
PAD_IN = PAD_DIMS[:-1]    # [320, 512, 512, 256, 128, 128, 128]
PAD_OUT = PAD_DIMS[1:]    # [512, 512, 256, 128, 128, 128, 128]
BIAS_TOTAL = sum(PAD_OUT)  # 1792 (all offsets are multiples of 128 -> aligned slices)


def mlp_kernel(x_ref, *refs):
    """One batch tile of the fused MLP.

    refs = (w1..w7  padded bf16 (in_pad, out_pad),
            bcat    (1, BIAS_TOTAL) f32 concatenated biases,
            out_ref (TB, 128) f32)
    Params use constant index_maps, so Pallas loads them once and keeps them in
    VMEM across batch tiles; only x/out tiles move per grid step.
    """
    out_ref = refs[-1]
    bcat_ref = refs[-2]
    w_refs = refs[:-2]

    h = x_ref[...]                               # (TB, 320) f32
    off = 0
    for layer in range(NUM_LAYERS):
        out_dim = PAD_OUT[layer]
        w = w_refs[layer][...]                   # (in_pad, out_pad) bf16
        b = bcat_ref[:, off:off + out_dim]       # (1, out_pad) f32, 128-aligned slice
        h = jnp.dot(h.astype(jnp.bfloat16), w,
                    preferred_element_type=jnp.float32) + b
        if layer < NUM_LAYERS - 1:               # ReLU on fc1..fc6, not fc7
            h = jnp.maximum(h, 0.0)
        off += out_dim
    out_ref[...] = h.astype(out_ref.dtype)


@jax.jit
def mlp_forward(x, packed):
    """packed = (w1..w7 padded bf16 (in_pad, out_pad), bias_concat (1, BIAS_TOTAL) f32)."""
    ws = packed[:-1]
    bcat = packed[-1]

    B = x.shape[0]
    TB = min(256, _round_up(B, 8))               # batch tile (sublane-aligned)
    B_pad = _round_up(B, TB)
    if B_pad != B:
        x = jnp.pad(x, ((0, B_pad - B), (0, 0)))
    grid = (B_pad // TB,)

    weight_specs = [pl.BlockSpec(w.shape, lambda i: (0, 0)) for w in ws]
    in_specs = ([pl.BlockSpec((TB, PAD_DIMS[0]), lambda i: (i, 0))]   # x tile
                + weight_specs                                        # resident params
                + [pl.BlockSpec((1, BIAS_TOTAL), lambda i: (0, 0))])  # resident biases
    out_spec = pl.BlockSpec((TB, PAD_OUT[-1]), lambda i: (i, 0))

    flops = 2 * B_pad * sum(PAD_IN[l] * PAD_OUT[l] for l in range(NUM_LAYERS))
    bytes_accessed = (x.size * 4
                      + sum(int(w.size) for w in ws) * 2
                      + BIAS_TOTAL * 4
                      + B_pad * PAD_OUT[-1] * 4)

    out = pl.pallas_call(
        mlp_kernel,
        out_shape=jax.ShapeDtypeStruct((B_pad, PAD_OUT[-1]), jnp.float32),
        grid=grid,
        in_specs=in_specs,
        out_specs=out_spec,
        compiler_params=pltpu.CompilerParams(
            dimension_semantics=("parallel",)),
        cost_estimate=pl.CostEstimate(
            flops=flops, transcendentals=0, bytes_accessed=bytes_accessed),
    )(x, *ws, bcat)

    # Drop batch padding and the zero-padded lanes of fc7 (128 -> 16).
    return out[:B, :LAYER_DIMS[-1]]


def init_params(key):
    """Unpadded f32 params matching torch nn.Linear init, stored as (in, out)."""
    params = []
    for layer in range(NUM_LAYERS):
        fan_in, fan_out = LAYER_DIMS[layer], LAYER_DIMS[layer + 1]
        key, kw, kb = jax.random.split(key, 3)
        bound = 1.0 / jnp.sqrt(fan_in)
        w = jax.random.uniform(kw, (fan_in, fan_out), jnp.float32, -bound, bound)
        b = jax.random.uniform(kb, (1, fan_out), jnp.float32, -bound, bound)
        params.extend([w, b])
    return tuple(params)


def pack_params(params):
    """Pad weights to lane-dense shapes, cast to bf16, concatenate biases (f32)."""
    ws = []
    bias_chunks = []
    for layer in range(NUM_LAYERS):
        w = params[2 * layer]
        b = params[2 * layer + 1]
        in_pad, out_pad = PAD_IN[layer], PAD_OUT[layer]
        w = jnp.pad(w, ((0, in_pad - w.shape[0]), (0, out_pad - w.shape[1])))
        b = jnp.pad(b, ((0, 0), (0, out_pad - b.shape[1])))
        ws.append(w.astype(jnp.bfloat16))
        bias_chunks.append(b.astype(jnp.float32))
    bcat = jnp.concatenate(bias_chunks, axis=1)  # (1, BIAS_TOTAL)
    return tuple(ws) + (bcat,)


def reference_forward(x, params):
    """Pure-JAX reference with the same numerics (bf16 matmul inputs, f32 accumulate)."""
    h = x
    for layer in range(NUM_LAYERS):
        w = params[2 * layer].astype(jnp.bfloat16)
        b = params[2 * layer + 1]
        h = jnp.dot(h.astype(jnp.bfloat16), w,
                    preferred_element_type=jnp.float32) + b
        if layer < NUM_LAYERS - 1:
            h = jnp.maximum(h, 0.0)
    return h


if __name__ == "__main__":
    key = jax.random.PRNGKey(0)
    key, kx = jax.random.split(key)

    batch = 8
    x = jax.random.normal(kx, (batch, LAYER_DIMS[0]), jnp.float32)
    params = init_params(key)
    packed = pack_params(params)

    out = mlp_forward(x, packed)
    out = jax.block_until_ready(out)

    ref = reference_forward(x, params)
    assert out.shape == (batch, LAYER_DIMS[-1]), out.shape
    assert jnp.allclose(out, ref, atol=1e-3, rtol=1e-3), "mismatch vs reference"

    print("KERNEL_OK")
</pallas_src>

<mosaic_0001>
module attributes {stable_mosaic.version = 11 : i64} {
  func.func @mlp_kernel(%arg0: i32, %arg1: memref<8x320xf32, #tpu.memory_space<vmem>>, %arg2: memref<320x512xbf16, #tpu.memory_space<vmem>>, %arg3: memref<512x512xbf16, #tpu.memory_space<vmem>>, %arg4: memref<512x256xbf16, #tpu.memory_space<vmem>>, %arg5: memref<256x128xbf16, #tpu.memory_space<vmem>>, %arg6: memref<128x128xbf16, #tpu.memory_space<vmem>>, %arg7: memref<128x128xbf16, #tpu.memory_space<vmem>>, %arg8: memref<128x128xbf16, #tpu.memory_space<vmem>>, %arg9: memref<1x1792xf32, #tpu.memory_space<vmem>>, %arg10: memref<8x128xf32, #tpu.memory_space<vmem>>) attributes {dimension_semantics = [#tpu.dimension_semantics<parallel>], iteration_bounds = array<i64: 1>, scalar_prefetch = 0 : i64, scratch_operands = 0 : i64, tpu.core_type = #tpu.core_type<tc>, window_params = [{transform_indices = @transform_0, window_bounds = array<i64: 8, 320>}, {pipeline_mode = #tpu.pipeline_mode<synchronous>, transform_indices = @transform_1, window_bounds = array<i64: 320, 512>}, {pipeline_mode = #tpu.pipeline_mode<synchronous>, transform_indices = @transform_2, window_bounds = array<i64: 512, 512>}, {pipeline_mode = #tpu.pipeline_mode<synchronous>, transform_indices = @transform_3, window_bounds = array<i64: 512, 256>}, {pipeline_mode = #tpu.pipeline_mode<synchronous>, transform_indices = @transform_4, window_bounds = array<i64: 256, 128>}, {pipeline_mode = #tpu.pipeline_mode<synchronous>, transform_indices = @transform_5, window_bounds = array<i64: 128, 128>}, {pipeline_mode = #tpu.pipeline_mode<synchronous>, transform_indices = @transform_6, window_bounds = array<i64: 128, 128>}, {pipeline_mode = #tpu.pipeline_mode<synchronous>, transform_indices = @transform_7, window_bounds = array<i64: 128, 128>}, {pipeline_mode = #tpu.pipeline_mode<synchronous>, transform_indices = @transform_8, window_bounds = array<i64: 1, 1792>}, {transform_indices = @transform_9, window_bounds = array<i64: 8, 128>}]} {
    %c0 = arith.constant 0 : index
    %c0_0 = arith.constant 0 : index
    %0 = vector.load %arg1[%c0, %c0_0] : memref<8x320xf32, #tpu.memory_space<vmem>>, vector<8x320xf32>
    %c0_1 = arith.constant 0 : index
    %c0_2 = arith.constant 0 : index
    %1 = vector.load %arg2[%c0_1, %c0_2] : memref<320x512xbf16, #tpu.memory_space<vmem>>, vector<320x512xbf16>
    %c0_3 = arith.constant 0 : index
    %c0_4 = arith.constant 0 : index
    %2 = vector.load %arg9[%c0_3, %c0_4] : memref<1x1792xf32, #tpu.memory_space<vmem>>, vector<1x512xf32>
    %3 = arith.truncf %0 : vector<8x320xf32> to vector<8x320xbf16>
    %cst = arith.constant dense<0.000000e+00> : vector<8x512xf32>
    %4 = tpu.matmul %3, %1, %cst {dimension_numbers = #tpu.dot_dimension_numbers<[1], [0], [0], [1], [0, 0, 1, 1], [], []>} : vector<8x320xbf16>, vector<320x512xbf16>, vector<8x512xf32> -> vector<8x512xf32>
    %5 = vector.broadcast %2 : vector<1x512xf32> to vector<8x512xf32>
    %6 = arith.addf %4, %5 : vector<8x512xf32>
    %cst_5 = arith.constant 0.000000e+00 : f32
    %7 = vector.broadcast %cst_5 : f32 to vector<8x512xf32>
    %8 = arith.maximumf %6, %7 : vector<8x512xf32>
    %c0_6 = arith.constant 0 : index
    %c0_7 = arith.constant 0 : index
    %9 = vector.load %arg3[%c0_6, %c0_7] : memref<512x512xbf16, #tpu.memory_space<vmem>>, vector<512x512xbf16>
    %c0_8 = arith.constant 0 : index
    %c512 = arith.constant 512 : index
    %10 = vector.load %arg9[%c0_8, %c512] : memref<1x1792xf32, #tpu.memory_space<vmem>>, vector<1x512xf32>
    %11 = arith.truncf %8 : vector<8x512xf32> to vector<8x512xbf16>
    %cst_9 = arith.constant dense<0.000000e+00> : vector<8x512xf32>
    %12 = tpu.matmul %11, %9, %cst_9 {dimension_numbers = #tpu.dot_dimension_numbers<[1], [0], [0], [1], [0, 0, 1, 1], [], []>} : vector<8x512xbf16>, vector<512x512xbf16>, vector<8x512xf32> -> vector<8x512xf32>
    %13 = vector.broadcast %10 : vector<1x512xf32> to vector<8x512xf32>
    %14 = arith.addf %12, %13 : vector<8x512xf32>
    %cst_10 = arith.constant 0.000000e+00 : f32
    %15 = vector.broadcast %cst_10 : f32 to vector<8x512xf32>
    %16 = arith.maximumf %14, %15 : vector<8x512xf32>
    %c0_11 = arith.constant 0 : index
    %c0_12 = arith.constant 0 : index
    %17 = vector.load %arg4[%c0_11, %c0_12] : memref<512x256xbf16, #tpu.memory_space<vmem>>, vector<512x256xbf16>
    %c0_13 = arith.constant 0 : index
    %c1024 = arith.constant 1024 : index
    %18 = vector.load %arg9[%c0_13, %c1024] : memref<1x1792xf32, #tpu.memory_space<vmem>>, vector<1x256xf32>
    %19 = arith.truncf %16 : vector<8x512xf32> to vector<8x512xbf16>
    %cst_14 = arith.constant dense<0.000000e+00> : vector<8x256xf32>
    %20 = tpu.matmul %19, %17, %cst_14 {dimension_numbers = #tpu.dot_dimension_numbers<[1], [0], [0], [1], [0, 0, 1, 1], [], []>} : vector<8x512xbf16>, vector<512x256xbf16>, vector<8x256xf32> -> vector<8x256xf32>
    %21 = vector.broadcast %18 : vector<1x256xf32> to vector<8x256xf32>
    %22 = arith.addf %20, %21 : vector<8x256xf32>
    %cst_15 = arith.constant 0.000000e+00 : f32
    %23 = vector.broadcast %cst_15 : f32 to vector<8x256xf32>
    %24 = arith.maximumf %22, %23 : vector<8x256xf32>
    %c0_16 = arith.constant 0 : index
    %c0_17 = arith.constant 0 : index
    %25 = vector.load %arg5[%c0_16, %c0_17] : memref<256x128xbf16, #tpu.memory_space<vmem>>, vector<256x128xbf16>
    %c0_18 = arith.constant 0 : index
    %c1280 = arith.constant 1280 : index
    %26 = vector.load %arg9[%c0_18, %c1280] : memref<1x1792xf32, #tpu.memory_space<vmem>>, vector<1x128xf32>
    %27 = arith.truncf %24 : vector<8x256xf32> to vector<8x256xbf16>
    %cst_19 = arith.constant dense<0.000000e+00> : vector<8x128xf32>
    %28 = tpu.matmul %27, %25, %cst_19 {dimension_numbers = #tpu.dot_dimension_numbers<[1], [0], [0], [1], [0, 0, 1, 1], [], []>} : vector<8x256xbf16>, vector<256x128xbf16>, vector<8x128xf32> -> vector<8x128xf32>
    %29 = vector.broadcast %26 : vector<1x128xf32> to vector<8x128xf32>
    %30 = arith.addf %28, %29 : vector<8x128xf32>
    %cst_20 = arith.constant 0.000000e+00 : f32
    %31 = vector.broadcast %cst_20 : f32 to vector<8x128xf32>
    %32 = arith.maximumf %30, %31 : vector<8x128xf32>
    %c0_21 = arith.constant 0 : index
    %c0_22 = arith.constant 0 : index
    %33 = vector.load %arg6[%c0_21, %c0_22] : memref<128x128xbf16, #tpu.memory_space<vmem>>, vector<128x128xbf16>
    %c0_23 = arith.constant 0 : index
    %c1408 = arith.constant 1408 : index
    %34 = vector.load %arg9[%c0_23, %c1408] : memref<1x1792xf32, #tpu.memory_space<vmem>>, vector<1x128xf32>
    %35 = arith.truncf %32 : vector<8x128xf32> to vector<8x128xbf16>
    %cst_24 = arith.constant dense<0.000000e+00> : vector<8x128xf32>
    %36 = tpu.matmul %35, %33, %cst_24 {dimension_numbers = #tpu.dot_dimension_numbers<[1], [0], [0], [1], [0, 0, 1, 1], [], []>} : vector<8x128xbf16>, vector<128x128xbf16>, vector<8x128xf32> -> vector<8x128xf32>
    %37 = vector.broadcast %34 : vector<1x128xf32> to vector<8x128xf32>
    %38 = arith.addf %36, %37 : vector<8x128xf32>
    %cst_25 = arith.constant 0.000000e+00 : f32
    %39 = vector.broadcast %cst_25 : f32 to vector<8x128xf32>
    %40 = arith.maximumf %38, %39 : vector<8x128xf32>
    %c0_26 = arith.constant 0 : index
    %c0_27 = arith.constant 0 : index
    %41 = vector.load %arg7[%c0_26, %c0_27] : memref<128x128xbf16, #tpu.memory_space<vmem>>, vector<128x128xbf16>
    %c0_28 = arith.constant 0 : index
    %c1536 = arith.constant 1536 : index
    %42 = vector.load %arg9[%c0_28, %c1536] : memref<1x1792xf32, #tpu.memory_space<vmem>>, vector<1x128xf32>
    %43 = arith.truncf %40 : vector<8x128xf32> to vector<8x128xbf16>
    %cst_29 = arith.constant dense<0.000000e+00> : vector<8x128xf32>
    %44 = tpu.matmul %43, %41, %cst_29 {dimension_numbers = #tpu.dot_dimension_numbers<[1], [0], [0], [1], [0, 0, 1, 1], [], []>} : vector<8x128xbf16>, vector<128x128xbf16>, vector<8x128xf32> -> vector<8x128xf32>
    %45 = vector.broadcast %42 : vector<1x128xf32> to vector<8x128xf32>
    %46 = arith.addf %44, %45 : vector<8x128xf32>
    %cst_30 = arith.constant 0.000000e+00 : f32
    %47 = vector.broadcast %cst_30 : f32 to vector<8x128xf32>
    %48 = arith.maximumf %46, %47 : vector<8x128xf32>
    %c0_31 = arith.constant 0 : index
    %c0_32 = arith.constant 0 : index
    %49 = vector.load %arg8[%c0_31, %c0_32] : memref<128x128xbf16, #tpu.memory_space<vmem>>, vector<128x128xbf16>
    %c0_33 = arith.constant 0 : index
    %c1664 = arith.constant 1664 : index
    %50 = vector.load %arg9[%c0_33, %c1664] : memref<1x1792xf32, #tpu.memory_space<vmem>>, vector<1x128xf32>
    %51 = arith.truncf %48 : vector<8x128xf32> to vector<8x128xbf16>
    %cst_34 = arith.constant dense<0.000000e+00> : vector<8x128xf32>
    %52 = tpu.matmul %51, %49, %cst_34 {dimension_numbers = #tpu.dot_dimension_numbers<[1], [0], [0], [1], [0, 0, 1, 1], [], []>} : vector<8x128xbf16>, vector<128x128xbf16>, vector<8x128xf32> -> vector<8x128xf32>
    %53 = vector.broadcast %50 : vector<1x128xf32> to vector<8x128xf32>
    %54 = arith.addf %52, %53 : vector<8x128xf32>
    %c0_35 = arith.constant 0 : index
    %c0_36 = arith.constant 0 : index
    %55 = vector.load %arg10[%c0_35, %c0_36] : memref<8x128xf32, #tpu.memory_space<vmem>>, vector<8x128xf32>
    tpu.vector_store %arg10[%c0_35, %c0_36], %54 {strides = array<i32>} : memref<8x128xf32, #tpu.memory_space<vmem>>, vector<8x128xf32>,
    return
  }
  func.func @transform_0(%arg0: i32) -> (i32, i32) {
    %c0_i32 = arith.constant 0 : i32
    %c0_i32_0 = arith.constant 0 : i32
    return %arg0, %c0_i32 : i32, i32
  }
  func.func @transform_1(%arg0: i32) -> (i32, i32) {
    %c0_i32 = arith.constant 0 : i32
    %c0_i32_0 = arith.constant 0 : i32
    %c0_i32_1 = arith.constant 0 : i32
    return %c0_i32, %c0_i32_0 : i32, i32
  }
  func.func @transform_2(%arg0: i32) -> (i32, i32) {
    %c0_i32 = arith.constant 0 : i32
    %c0_i32_0 = arith.constant 0 : i32
    %c0_i32_1 = arith.constant 0 : i32
    return %c0_i32, %c0_i32_0 : i32, i32
  }
  func.func @transform_3(%arg0: i32) -> (i32, i32) {
    %c0_i32 = arith.constant 0 : i32
    %c0_i32_0 = arith.constant 0 : i32
    %c0_i32_1 = arith.constant 0 : i32
    return %c0_i32, %c0_i32_0 : i32, i32
  }
  func.func @transform_4(%arg0: i32) -> (i32, i32) {
    %c0_i32 = arith.constant 0 : i32
    %c0_i32_0 = arith.constant 0 : i32
    %c0_i32_1 = arith.constant 0 : i32
    return %c0_i32, %c0_i32_0 : i32, i32
  }
  func.func @transform_5(%arg0: i32) -> (i32, i32) {
    %c0_i32 = arith.constant 0 : i32
    %c0_i32_0 = arith.constant 0 : i32
    %c0_i32_1 = arith.constant 0 : i32
    return %c0_i32, %c0_i32_0 : i32, i32
  }
  func.func @transform_6(%arg0: i32) -> (i32, i32) {
    %c0_i32 = arith.constant 0 : i32
    %c0_i32_0 = arith.constant 0 : i32
    %c0_i32_1 = arith.constant 0 : i32
    return %c0_i32, %c0_i32_0 : i32, i32
  }
  func.func @transform_7(%arg0: i32) -> (i32, i32) {
    %c0_i32 = arith.constant 0 : i32
    %c0_i32_0 = arith.constant 0 : i32
    %c0_i32_1 = arith.constant 0 : i32
    return %c0_i32, %c0_i32_0 : i32, i32
  }
  func.func @transform_8(%arg0: i32) -> (i32, i32) {
    %c0_i32 = arith.constant 0 : i32
    %c0_i32_0 = arith.constant 0 : i32
    %c0_i32_1 = arith.constant 0 : i32
    return %c0_i32, %c0_i32_0 : i32, i32
  }
  func.func @transform_9(%arg0: i32) -> (i32, i32) {
    %c0_i32 = arith.constant 0 : i32
    %c0_i32_0 = arith.constant 0 : i32
    return %arg0, %c0_i32 : i32, i32
  }
}

</mosaic_0001>

<llo_original>
// kernel: mlp_forward.1
$region0: #{mlp_forward.1}
  #allocation0 [shape = 'u32[]', space=smem, size = 0x4, offset = 0x4, fixed_abs, tag = 'smem constant byte address 0x4 - core index']
  #allocation1 [shape = 'u32[72,128]{1,0:T(1,128)}', space=vmem, size = 0x9000, scoped, tag = 'internal scratch']
  %s0 = inlined_call_operand.hbm [shape: f32[8,320], index: 0, kind: input, shape index: {}]
  %s1 = inlined_call_operand.hbm [shape: bf16[320,512], index: 1, kind: input, shape index: {}]
  %s2 = inlined_call_operand.hbm [shape: bf16[512,512], index: 2, kind: input, shape index: {}]
  %s3 = inlined_call_operand.hbm [shape: bf16[512,256], index: 3, kind: input, shape index: {}]
  %s4 = inlined_call_operand.hbm [shape: bf16[256,128], index: 4, kind: input, shape index: {}]
  %s5 = inlined_call_operand.hbm [shape: bf16[128,128], index: 5, kind: input, shape index: {}]
  %s6 = inlined_call_operand.hbm [shape: bf16[128,128], index: 6, kind: input, shape index: {}]
  %s7 = inlined_call_operand.hbm [shape: bf16[128,128], index: 7, kind: input, shape index: {}]
  %s8 = inlined_call_operand.hbm [shape: f32[1,1792], index: 8, kind: input, shape index: {}]
  %s9 = inlined_call_operand.hbm [shape: f32[8,128], index: 9, kind: output, shape index: {}]
  %s10 = sld [smem:[#allocation0]]
  $region82: #{mlp_forward.1} parent=0
    _
  %s12 = ssub.s32 1, %s10
  %s13 = scalar_select 0, %s12, %s10
  $region1: #{mlp_forward.1} parent=0
    #allocation2 [shape = 'u8[12288]{0}', space=vmem, size = 0x3000, scoped, tag = 'input window, operand 0, single buffered']
    #allocation3 [shape = 's32[1]{0}', space=sflag, size = 0x4, scoped, tag = 'scoped memory for mlp_forward.1']
    #allocation4 [shape = 's32[1]{0}', space=sflag, size = 0x4, scoped, tag = 'scoped memory for mlp_forward.1']
    #allocation5 [shape = 'u8[327680]{0}', space=vmem, size = 0x50000, scoped, tag = 'input window, operand 1, single buffered']
    #allocation6 [shape = 's32[1]{0}', space=sflag, size = 0x4, scoped, tag = 'scoped memory for mlp_forward.1']
    #allocation7 [shape = 'u8[524288]{0}', space=vmem, size = 0x80000, scoped, tag = 'input window, operand 2, single buffered']
    #allocation8 [shape = 'u8[262144]{0}', space=vmem, size = 0x40000, scoped, tag = 'input window, operand 3, single buffered']
    #allocation9 [shape = 's32[1]{0}', space=sflag, size = 0x4, scoped, tag = 'scoped memory for mlp_forward.1']
    #allocation10 [shape = 'u8[65536]{0}', space=vmem, size = 0x10000, scoped, tag = 'input window, operand 4, single buffered']
    #allocation11 [shape = 'u8[32768]{0}', space=vmem, size = 0x8000, scoped, tag = 'input window, operand 5, single buffered']
    #allocation12 [shape = 's32[1]{0}', space=sflag, size = 0x4, scoped, tag = 'scoped memory for mlp_forward.1']
    #allocation13 [shape = 'u8[32768]{0}', space=vmem, size = 0x8000, scoped, tag = 'input window, operand 6, single buffered']
    #allocation14 [shape = 'u8[32768]{0}', space=vmem, size = 0x8000, scoped, tag = 'input window, operand 7, single buffered']
    #allocation15 [shape = 's32[1]{0}', space=sflag, size = 0x4, scoped, tag = 'scoped memory for mlp_forward.1']
    #allocation16 [shape = 'u8[7168]{0}', space=vmem, size = 0x1c00, scoped, tag = 'input window, operand 8, single buffered']
    #allocation17 [shape = 'u8[4096]{0}', space=vmem, size = 0x1000, scoped, tag = 'output window, operand 0, single buffered']
    %14 = vsyncpa [#allocation3], 0
    %15 = vsyncpa [#allocation6], 0
    %16 = vsyncpa [#allocation9], 0
    %17 = vsyncpa [#allocation12], 0
    %18 = vsyncpa [#allocation15], 0
    %19 = vsyncpa [#allocation4], 0
    // Predicated region
    $region2: #{mlp_forward.1} parent=1 // pred_check
      _
    $region3: #{mlp_forward.1} parent=1 // pred_check_branch
      %21 = sbr.rel (0) target = $region5
    $region4: #{mlp_forward.1} parent=1 // pred_region
      %23 = vsyncadd [#allocation3], 0
      %s25 = sshll.u32 %s0, 4
      %s26 = int_to_ptr.hbm [resolvable:$true] %s25
      %s27 = sshll.u32 [#allocation2], 4
      %s28 = int_to_ptr.vmem [resolvable:$true] %s27
      %30 = dma.hbm_to_vmem [thread:$0]  %s26, 384, %s28, [#allocation3]
    $region5: #{mlp_forward.1} parent=1 // pred_fallthru
      _
    // Predicated region
    $region6: #{mlp_forward.1} parent=1 // pred_check
      _
    $region7: #{mlp_forward.1} parent=1 // pred_check_branch
      %32 = sbr.rel (0) target = $region9
    $region8: #{mlp_forward.1} parent=1 // pred_region
      %34 = vsyncadd [#allocation6], 0
      %s35 = sshll.u32 %s1, 4
      %s36 = int_to_ptr.hbm [resolvable:$true] %s35
      %s37 = sshll.u32 [#allocation5], 4
      %s38 = int_to_ptr.vmem [resolvable:$true] %s37
      %43 = dma.hbm_to_vmem [thread:$0]  %s36, 10240, %s38, [#allocation6], 256, 256, 16
    $region9: #{mlp_forward.1} parent=1 // pred_fallthru
      _
    // Predicated region
    $region10: #{mlp_forward.1} parent=1 // pred_check
      _
    $region11: #{mlp_forward.1} parent=1 // pred_check_branch
      %45 = sbr.rel (0) target = $region13
    $region12: #{mlp_forward.1} parent=1 // pred_region
      %47 = vsyncadd [#allocation6], 0
      %s48 = sshll.u32 %s2, 4
      %s49 = int_to_ptr.hbm [resolvable:$true] %s48
      %s50 = sshll.u32 [#allocation7], 4
      %s51 = int_to_ptr.vmem [resolvable:$true] %s50
      %56 = dma.hbm_to_vmem [thread:$0]  %s49, 16384, %s51, [#allocation6], 256, 256, 16
    $region13: #{mlp_forward.1} parent=1 // pred_fallthru
      _
    // Predicated region
    $region14: #{mlp_forward.1} parent=1 // pred_check
      _
    $region15: #{mlp_forward.1} parent=1 // pred_check_branch
      %58 = sbr.rel (0) target = $region17
    $region16: #{mlp_forward.1} parent=1 // pred_region
      %60 = vsyncadd [#allocation9], 0
      %s61 = sshll.u32 %s3, 4
      %s62 = int_to_ptr.hbm [resolvable:$true] %s61
      %s63 = sshll.u32 [#allocation8], 4
      %s64 = int_to_ptr.vmem [resolvable:$true] %s63
      %69 = dma.hbm_to_vmem [thread:$0]  %s62, 8192, %s64, [#allocation9], 128, 128, 8
    $region17: #{mlp_forward.1} parent=1 // pred_fallthru
      _
    // Predicated region
    $region18: #{mlp_forward.1} parent=1 // pred_check
      _
    $region19: #{mlp_forward.1} parent=1 // pred_check_branch
      %71 = sbr.rel (0) target = $region21
    $region20: #{mlp_forward.1} parent=1 // pred_region
      %73 = vsyncadd [#allocation9], 0
      %s74 = sshll.u32 %s4, 4
      %s75 = int_to_ptr.hbm [resolvable:$true] %s74
      %s76 = sshll.u32 [#allocation10], 4
      %s77 = int_to_ptr.vmem [resolvable:$true] %s76
      %82 = dma.hbm_to_vmem [thread:$0]  %s75, 2048, %s77, [#allocation9], 64, 64, 4
    $region21: #{mlp_forward.1} parent=1 // pred_fallthru
      _
    // Predicated region
    $region22: #{mlp_forward.1} parent=1 // pred_check
      _
    $region23: #{mlp_forward.1} parent=1 // pred_check_branch
      %84 = sbr.rel (0) target = $region25
    $region24: #{mlp_forward.1} parent=1 // pred_region
      %86 = vsyncadd [#allocation12], 0
      %s87 = sshll.u32 %s5, 4
      %s88 = int_to_ptr.hbm [resolvable:$true] %s87
      %s89 = sshll.u32 [#allocation11], 4
      %s90 = int_to_ptr.vmem [resolvable:$true] %s89
      %95 = dma.hbm_to_vmem [thread:$0]  %s88, 1024, %s90, [#allocation12], 64, 64, 4
    $region25: #{mlp_forward.1} parent=1 // pred_fallthru
      _
    // Predicated region
    $region26: #{mlp_forward.1} parent=1 // pred_check
      _
    $region27: #{mlp_forward.1} parent=1 // pred_check_branch
      %97 = sbr.rel (0) target = $region29
    $region28: #{mlp_forward.1} parent=1 // pred_region
      %99 = vsyncadd [#allocation12], 0
      %s100 = sshll.u32 %s6, 4
      %s101 = int_to_ptr.hbm [resolvable:$true] %s100
      %s102 = sshll.u32 [#allocation13], 4
      %s103 = int_to_ptr.vmem [resolvable:$true] %s102
      %108 = dma.hbm_to_vmem [thread:$0]  %s101, 1024, %s103, [#allocation12], 64, 64, 4
    $region29: #{mlp_forward.1} parent=1 // pred_fallthru
      _
    // Predicated region
    $region30: #{mlp_forward.1} parent=1 // pred_check
      _
    $region31: #{mlp_forward.1} parent=1 // pred_check_branch
      %110 = sbr.rel (0) target = $region33
    $region32: #{mlp_forward.1} parent=1 // pred_region
      %112 = vsyncadd [#allocation15], 0
      %s113 = sshll.u32 %s7, 4
      %s114 = int_to_ptr.hbm [resolvable:$true] %s113
      %s115 = sshll.u32 [#allocation14], 4
      %s116 = int_to_ptr.vmem [resolvable:$true] %s115
      %121 = dma.hbm_to_vmem [thread:$0]  %s114, 1024, %s116, [#allocation15], 64, 64, 4
    $region33: #{mlp_forward.1} parent=1 // pred_fallthru
      _
    // Predicated region
    $region34: #{mlp_forward.1} parent=1 // pred_check
      _
    $region35: #{mlp_forward.1} parent=1 // pred_check_branch
      %123 = sbr.rel (0) target = $region37
    $region36: #{mlp_forward.1} parent=1 // pred_region
      %125 = vsyncadd [#allocation15], 0
      %s127 = sshll.u32 %s8, 4
      %s128 = int_to_ptr.hbm [resolvable:$true] %s127
      %s129 = sshll.u32 [#allocation16], 4
      %s130 = int_to_ptr.vmem [resolvable:$true] %s129
      %132 = dma.hbm_to_vmem [thread:$0]  %s128, 224, %s130, [#allocation15]
    $region37: #{mlp_forward.1} parent=1 // pred_fallthru
      _
    // Predicated region
    $region38: #{mlp_forward.1} parent=1 // pred_check
      _
    $region39: #{mlp_forward.1} parent=1 // pred_check_branch
      %134 = sbr.rel (0) target = $region41
    $region40: #{mlp_forward.1} parent=1 // pred_region
      %136 = dma.done [#allocation3], 384
    $region41: #{mlp_forward.1} parent=1 // pred_fallthru
      _
    // Predicated region
    $region42: #{mlp_forward.1} parent=1 // pred_check
      _
    $region43: #{mlp_forward.1} parent=1 // pred_check_branch
      %138 = sbr.rel (0) target = $region45
    $region44: #{mlp_forward.1} parent=1 // pred_region
      %140 = dma.done [#allocation6], 10240
    $region45: #{mlp_forward.1} parent=1 // pred_fallthru
      _
    // Predicated region
    $region46: #{mlp_forward.1} parent=1 // pred_check
      _
    $region47: #{mlp_forward.1} parent=1 // pred_check_branch
      %142 = sbr.rel (0) target = $region49
    $region48: #{mlp_forward.1} parent=1 // pred_region
      %144 = dma.done [#allocation6], 16384
    $region49: #{mlp_forward.1} parent=1 // pred_fallthru
      _
    // Predicated region
    $region50: #{mlp_forward.1} parent=1 // pred_check
      _
    $region51: #{mlp_forward.1} parent=1 // pred_check_branch
      %146 = sbr.rel (0) target = $region53
    $region52: #{mlp_forward.1} parent=1 // pred_region
      %148 = dma.done [#allocation9], 8192
    $region53: #{mlp_forward.1} parent=1 // pred_fallthru
      _
    // Predicated region
    $region54: #{mlp_forward.1} parent=1 // pred_check
      _
    $region55: #{mlp_forward.1} parent=1 // pred_check_branch
      %150 = sbr.rel (0) target = $region57
    $region56: #{mlp_forward.1} parent=1 // pred_region
      %152 = dma.done [#allocation9], 2048
    $region57: #{mlp_forward.1} parent=1 // pred_fallthru
      _
    // Predicated region
    $region58: #{mlp_forward.1} parent=1 // pred_check
      _
    $region59: #{mlp_forward.1} parent=1 // pred_check_branch
      %154 = sbr.rel (0) target = $region61
    $region60: #{mlp_forward.1} parent=1 // pred_region
      %156 = dma.done [#allocation12], 1024
    $region61: #{mlp_forward.1} parent=1 // pred_fallthru
      _
    // Predicated region
    $region62: #{mlp_forward.1} parent=1 // pred_check
      _
    $region63: #{mlp_forward.1} parent=1 // pred_check_branch
      %158 = sbr.rel (0) target = $region65
    $region64: #{mlp_forward.1} parent=1 // pred_region
      %160 = dma.done [#allocation12], 1024
    $region65: #{mlp_forward.1} parent=1 // pred_fallthru
      _
    // Predicated region
    $region66: #{mlp_forward.1} parent=1 // pred_check
      _
    $region67: #{mlp_forward.1} parent=1 // pred_check_branch
      %162 = sbr.rel (0) target = $region69
    $region68: #{mlp_forward.1} parent=1 // pred_region
      %164 = dma.done [#allocation15], 1024
    $region69: #{mlp_forward.1} parent=1 // pred_fallthru
      _
    // Predicated region
    $region70: #{mlp_forward.1} parent=1 // pred_check
      _
    $region71: #{mlp_forward.1} parent=1 // pred_check_branch
      %166 = sbr.rel (0) target = $region73
    $region72: #{mlp_forward.1} parent=1 // pred_region
      %168 = dma.done [#allocation15], 224
    $region73: #{mlp_forward.1} parent=1 // pred_fallthru
      _
    %v170 = vld [vmem:[#allocation2] sm:$0xff]
    %v171 = vld [vmem:[#allocation2 + $0x8] sm:$0xff]
    %v172 = vld [vmem:[#allocation2 + $0x10] sm:$0xff]
    %v173 = vld [vmem:[#allocation5] sm:$0xff]
    %v174 = vld [vmem:[#allocation5 + $0x8] sm:$0xff]
    %v175 = vld [vmem:[#allocation5 + $0x10] sm:$0xff]
    %v176 = vld [vmem:[#allocation5 + $0x18] sm:$0xff]
    %v177 = vld [vmem:[#allocation5 + $0x20] sm:$0xff]
    %v178 = vld [vmem:[#allocation5 + $0x28] sm:$0xff]
    %v179 = vld [vmem:[#allocation5 + $0x30] sm:$0xff]
    %v180 = vld [vmem:[#allocation5 + $0x38] sm:$0xff]
    %v181 = vld [vmem:[#allocation5 + $0x40] sm:$0xff]
    %v182 = vld [vmem:[#allocation5 + $0x48] sm:$0xff]
    %v183 = vld [vmem:[#allocation5 + $0x50] sm:$0xff]
    %v184 = vld [vmem:[#allocation5 + $0x58] sm:$0xff]
    %v185 = vld [vmem:[#allocation5 + $0x60] sm:$0xff]
    %v186 = vld [vmem:[#allocation5 + $0x68] sm:$0xff]
    %v187 = vld [vmem:[#allocation5 + $0x70] sm:$0xff]
    %v188 = vld [vmem:[#allocation5 + $0x78] sm:$0xff]
    %v189 = vld [vmem:[#allocation5 + $0x80] sm:$0xff]
    %v190 = vld [vmem:[#allocation5 + $0x88] sm:$0xff]
    %v191 = vld [vmem:[#allocation5 + $0x90] sm:$0xff]
    %v192 = vld [vmem:[#allocation5 + $0x98] sm:$0xff]
    %v193 = vld [vmem:[#allocation5 + $0xa0] sm:$0xff]
    %v194 = vld [vmem:[#allocation5 + $0xa8] sm:$0xff]
    %v195 = vld [vmem:[#allocation5 + $0xb0] sm:$0xff]
    %v196 = vld [vmem:[#allocation5 + $0xb8] sm:$0xff]
    %v197 = vld [vmem:[#allocation5 + $0xc0] sm:$0xff]
    %v198 = vld [vmem:[#allocation5 + $0xc8] sm:$0xff]
    %v199 = vld [vmem:[#allocation5 + $0xd0] sm:$0xff]
    %v200 = vld [vmem:[#allocation5 + $0xd8] sm:$0xff]
    %v201 = vld [vmem:[#allocation5 + $0xe0] sm:$0xff]
    %v202 = vld [vmem:[#allocation5 + $0xe8] sm:$0xff]
    %v203 = vld [vmem:[#allocation5 + $0xf0] sm:$0xff]
    %v204 = vld [vmem:[#allocation5 + $0xf8] sm:$0xff]
    %v205 = vld [vmem:[#allocation5 + $0x100] sm:$0xff]
    %v206 = vld [vmem:[#allocation5 + $0x108] sm:$0xff]
    %v207 = vld [vmem:[#allocation5 + $0x110] sm:$0xff]
    %v208 = vld [vmem:[#allocation5 + $0x118] sm:$0xff]
    %v209 = vld [vmem:[#allocation5 + $0x120] sm:$0xff]
    %v210 = vld [vmem:[#allocation5 + $0x128] sm:$0xff]
    %v211 = vld [vmem:[#allocation5 + $0x130] sm:$0xff]
    %v212 = vld [vmem:[#allocation5 + $0x138] sm:$0xff]
    %v213 = vld [vmem:[#allocation5 + $0x140] sm:$0xff]
    %v214 = vld [vmem:[#allocation5 + $0x148] sm:$0xff]
    %v215 = vld [vmem:[#allocation5 + $0x150] sm:$0xff]
    %v216 = vld [vmem:[#allocation5 + $0x158] sm:$0xff]
    %v217 = vld [vmem:[#allocation5 + $0x160] sm:$0xff]
    %v218 = vld [vmem:[#allocation5 + $0x168] sm:$0xff]
    %v219 = vld [vmem:[#allocation5 + $0x170] sm:$0xff]
    %v220 = vld [vmem:[#allocation5 + $0x178] sm:$0xff]
    %v221 = vld [vmem:[#allocation5 + $0x180] sm:$0xff]
    %v222 = vld [vmem:[#allocation5 + $0x188] sm:$0xff]
    %v223 = vld [vmem:[#allocation5 + $0x190] sm:$0xff]
    %v224 = vld [vmem:[#allocation5 + $0x198] sm:$0xff]
    %v225 = vld [vmem:[#allocation5 + $0x1a0] sm:$0xff]
    %v226 = vld [vmem:[#allocation5 + $0x1a8] sm:$0xff]
    %v227 = vld [vmem:[#allocation5 + $0x1b0] sm:$0xff]
    %v228 = vld [vmem:[#allocation5 + $0x1b8] sm:$0xff]
    %v229 = vld [vmem:[#allocation5 + $0x1c0] sm:$0xff]
    %v230 = vld [vmem:[#allocation5 + $0x1c8] sm:$0xff]
    %v231 = vld [vmem:[#allocation5 + $0x1d0] sm:$0xff]
    %v232 = vld [vmem:[#allocation5 + $0x1d8] sm:$0xff]
    %v233 = vld [vmem:[#allocation5 + $0x1e0] sm:$0xff]
    %v234 = vld [vmem:[#allocation5 + $0x1e8] sm:$0xff]
    %v235 = vld [vmem:[#allocation5 + $0x1f0] sm:$0xff]
    %v236 = vld [vmem:[#allocation5 + $0x1f8] sm:$0xff]
    %v237 = vld [vmem:[#allocation5 + $0x200] sm:$0xff]
    %v238 = vld [vmem:[#allocation5 + $0x208] sm:$0xff]
    %v239 = vld [vmem:[#allocation5 + $0x210] sm:$0xff]
    %v240 = vld [vmem:[#allocation5 + $0x218] sm:$0xff]
    %v241 = vld [vmem:[#allocation5 + $0x220] sm:$0xff]
    %v242 = vld [vmem:[#allocation5 + $0x228] sm:$0xff]
    %v243 = vld [vmem:[#allocation5 + $0x230] sm:$0xff]
    %v244 = vld [vmem:[#allocation5 + $0x238] sm:$0xff]
    %v245 = vld [vmem:[#allocation5 + $0x240] sm:$0xff]
    %v246 = vld [vmem:[#allocation5 + $0x248] sm:$0xff]
    %v247 = vld [vmem:[#allocation5 + $0x250] sm:$0xff]
    %v248 = vld [vmem:[#allocation5 + $0x258] sm:$0xff]
    %v249 = vld [vmem:[#allocation5 + $0x260] sm:$0xff]
    %v250 = vld [vmem:[#allocation5 + $0x268] sm:$0xff]
    %v251 = vld [vmem:[#allocation5 + $0x270] sm:$0xff]
    %v252 = vld [vmem:[#allocation5 + $0x278] sm:$0xff]
    %v253 = vld [vmem:[#allocation16] sm:$0xf]
    %v254 = vpack.c.bf16 %v170, %v170
    %v255 = vpack.c.bf16 %v171, %v171
    %v256 = vpack.c.bf16 %v172, %v172
    %v258 = vperm.slane %v253, 0
    %v259 = vperm.slane %v253, 1
    %v260 = vperm.slane %v253, 2
    %v261 = vperm.slane %v253, 3
    %v346 = vunpack.c.l.b16 %v173
    %v347 = vunpack.c.h.b16 %v173
    %v348 = vunpack.c.l.b16 %v174
    %v349 = vunpack.c.h.b16 %v174
    %v350 = vunpack.c.l.b16 %v175
    %v351 = vunpack.c.h.b16 %v175
    %v352 = vunpack.c.l.b16 %v176
    %v353 = vunpack.c.h.b16 %v176
    %v354 = vunpack.c.l.b16 %v177
    %v355 = vunpack.c.h.b16 %v177
    %v356 = vunpack.c.l.b16 %v178
    %v357 = vunpack.c.h.b16 %v178
    %v358 = vunpack.c.l.b16 %v179
    %v359 = vunpack.c.h.b16 %v179
    %v360 = vunpack.c.l.b16 %v180
    %v361 = vunpack.c.h.b16 %v180
    %v362 = vunpack.c.l.b16 %v181
    %v363 = vunpack.c.h.b16 %v181
    %v364 = vunpack.c.l.b16 %v182
    %v365 = vunpack.c.h.b16 %v182
    %v366 = vunpack.c.l.b16 %v183
    %v367 = vunpack.c.h.b16 %v183
    %v368 = vunpack.c.l.b16 %v184
    %v369 = vunpack.c.h.b16 %v184
    %v370 = vunpack.c.l.b16 %v185
    %v371 = vunpack.c.h.b16 %v185
    %v372 = vunpack.c.l.b16 %v186
    %v373 = vunpack.c.h.b16 %v186
    %v374 = vunpack.c.l.b16 %v187
    %v375 = vunpack.c.h.b16 %v187
    %v376 = vunpack.c.l.b16 %v188
    %v377 = vunpack.c.h.b16 %v188
    %v378 = vunpack.c.l.b16 %v189
    %v379 = vunpack.c.h.b16 %v189
    %v380 = vunpack.c.l.b16 %v190
    %v381 = vunpack.c.h.b16 %v190
    %v382 = vunpack.c.l.b16 %v191
    %v383 = vunpack.c.h.b16 %v191
    %v384 = vunpack.c.l.b16 %v192
    %v385 = vunpack.c.h.b16 %v192
    %v386 = vunpack.c.l.b16 %v193
    %v387 = vunpack.c.h.b16 %v193
    %v388 = vunpack.c.l.b16 %v194
    %v389 = vunpack.c.h.b16 %v194
    %v390 = vunpack.c.l.b16 %v195
    %v391 = vunpack.c.h.b16 %v195
    %v392 = vunpack.c.l.b16 %v196
    %v393 = vunpack.c.h.b16 %v196
    %v394 = vunpack.c.l.b16 %v197
    %v395 = vunpack.c.h.b16 %v197
    %v396 = vunpack.c.l.b16 %v198
    %v397 = vunpack.c.h.b16 %v198
    %v398 = vunpack.c.l.b16 %v199
    %v399 = vunpack.c.h.b16 %v199
    %v400 = vunpack.c.l.b16 %v200
    %v401 = vunpack.c.h.b16 %v200
    %v402 = vunpack.c.l.b16 %v201
    %v403 = vunpack.c.h.b16 %v201
    %v404 = vunpack.c.l.b16 %v202
    %v405 = vunpack.c.h.b16 %v202
    %v406 = vunpack.c.l.b16 %v203
    %v407 = vunpack.c.h.b16 %v203
    %v408 = vunpack.c.l.b16 %v204
    %v409 = vunpack.c.h.b16 %v204
    %v410 = vunpack.c.l.b16 %v205
    %v411 = vunpack.c.h.b16 %v205
    %v412 = vunpack.c.l.b16 %v206
    %v413 = vunpack.c.h.b16 %v206
    %v414 = vunpack.c.l.b16 %v207
    %v415 = vunpack.c.h.b16 %v207
    %v416 = vunpack.c.l.b16 %v208
    %v417 = vunpack.c.h.b16 %v208
    %v418 = vunpack.c.l.b16 %v209
    %v419 = vunpack.c.h.b16 %v209
    %v420 = vunpack.c.l.b16 %v210
    %v421 = vunpack.c.h.b16 %v210
    %v422 = vunpack.c.l.b16 %v211
    %v423 = vunpack.c.h.b16 %v211
    %v424 = vunpack.c.l.b16 %v212
    %v425 = vunpack.c.h.b16 %v212
    %v426 = vunpack.c.l.b16 %v213
    %v427 = vunpack.c.h.b16 %v213
    %v428 = vunpack.c.l.b16 %v214
    %v429 = vunpack.c.h.b16 %v214
    %v430 = vunpack.c.l.b16 %v215
    %v431 = vunpack.c.h.b16 %v215
    %v432 = vunpack.c.l.b16 %v216
    %v433 = vunpack.c.h.b16 %v216
    %v434 = vunpack.c.l.b16 %v217
    %v435 = vunpack.c.h.b16 %v217
    %v436 = vunpack.c.l.b16 %v218
    %v437 = vunpack.c.h.b16 %v218
    %v438 = vunpack.c.l.b16 %v219
    %v439 = vunpack.c.h.b16 %v219
    %v440 = vunpack.c.l.b16 %v220
    %v441 = vunpack.c.h.b16 %v220
    %v442 = vunpack.c.l.b16 %v221
    %v443 = vunpack.c.h.b16 %v221
    %v444 = vunpack.c.l.b16 %v222
    %v445 = vunpack.c.h.b16 %v222
    %v446 = vunpack.c.l.b16 %v223
    %v447 = vunpack.c.h.b16 %v223
    %v448 = vunpack.c.l.b16 %v224
    %v449 = vunpack.c.h.b16 %v224
    %v450 = vunpack.c.l.b16 %v225
    %v451 = vunpack.c.h.b16 %v225
    %v452 = vunpack.c.l.b16 %v226
    %v453 = vunpack.c.h.b16 %v226
    %v454 = vunpack.c.l.b16 %v227
    %v455 = vunpack.c.h.b16 %v227
    %v456 = vunpack.c.l.b16 %v228
    %v457 = vunpack.c.h.b16 %v228
    %v458 = vunpack.c.l.b16 %v229
    %v459 = vunpack.c.h.b16 %v229
    %v460 = vunpack.c.l.b16 %v230
    %v461 = vunpack.c.h.b16 %v230
    %v462 = vunpack.c.l.b16 %v231
    %v463 = vunpack.c.h.b16 %v231
    %v464 = vunpack.c.l.b16 %v232
    %v465 = vunpack.c.h.b16 %v232
    %v466 = vunpack.c.l.b16 %v233
    %v467 = vunpack.c.h.b16 %v233
    %v468 = vunpack.c.l.b16 %v234
    %v469 = vunpack.c.h.b16 %v234
    %v470 = vunpack.c.l.b16 %v235
    %v471 = vunpack.c.h.b16 %v235
    %v472 = vunpack.c.l.b16 %v236
    %v473 = vunpack.c.h.b16 %v236
    %v474 = vunpack.c.l.b16 %v237
    %v475 = vunpack.c.h.b16 %v237
    %v476 = vunpack.c.l.b16 %v238
    %v477 = vunpack.c.h.b16 %v238
    %v478 = vunpack.c.l.b16 %v239
    %v479 = vunpack.c.h.b16 %v239
    %v480 = vunpack.c.l.b16 %v240
    %v481 = vunpack.c.h.b16 %v240
    %v482 = vunpack.c.l.b16 %v241
    %v483 = vunpack.c.h.b16 %v241
    %v484 = vunpack.c.l.b16 %v242
    %v485 = vunpack.c.h.b16 %v242
    %v486 = vunpack.c.l.b16 %v243
    %v487 = vunpack.c.h.b16 %v243
    %v488 = vunpack.c.l.b16 %v244
    %v489 = vunpack.c.h.b16 %v244
    %v490 = vunpack.c.l.b16 %v245
    %v491 = vunpack.c.h.b16 %v245
    %v492 = vunpack.c.l.b16 %v246
    %v493 = vunpack.c.h.b16 %v246
    %v494 = vunpack.c.l.b16 %v247
    %v495 = vunpack.c.h.b16 %v247
    %v496 = vunpack.c.l.b16 %v248
    %v497 = vunpack.c.h.b16 %v248
    %v498 = vunpack.c.l.b16 %v249
    %v499 = vunpack.c.h.b16 %v249
    %v500 = vunpack.c.l.b16 %v250
    %v501 = vunpack.c.h.b16 %v250
    %v502 = vunpack.c.l.b16 %v251
    %v503 = vunpack.c.h.b16 %v251
    %v504 = vunpack.c.l.b16 %v252
    %v505 = vunpack.c.h.b16 %v252
    %v506 = vpack.c.b16 %v350, %v346
    %v507 = vpack.c.b16 %v351, %v347
    %v508 = vpack.c.b16 %v352, %v348
    %v509 = vpack.c.b16 %v353, %v349
    %v510 = vpack.c.b16 %v358, %v354
    %v511 = vpack.c.b16 %v359, %v355
    %v512 = vpack.c.b16 %v360, %v356
    %v513 = vpack.c.b16 %v361, %v357
    %v514 = vpack.c.b16 %v366, %v362
    %v515 = vpack.c.b16 %v367, %v363
    %v516 = vpack.c.b16 %v368, %v364
    %v517 = vpack.c.b16 %v369, %v365
    %v518 = vpack.c.b16 %v374, %v370
    %v519 = vpack.c.b16 %v375, %v371
    %v520 = vpack.c.b16 %v376, %v372
    %v521 = vpack.c.b16 %v377, %v373
    %v522 = vpack.c.b16 %v382, %v378
    %v523 = vpack.c.b16 %v383, %v379
    %v524 = vpack.c.b16 %v384, %v380
    %v525 = vpack.c.b16 %v385, %v381
    %v526 = vpack.c.b16 %v390, %v386
    %v527 = vpack.c.b16 %v391, %v387
    %v528 = vpack.c.b16 %v392, %v388
    %v529 = vpack.c.b16 %v393, %v389
    %v530 = vpack.c.b16 %v398, %v394
    %v531 = vpack.c.b16 %v399, %v395
    %v532 = vpack.c.b16 %v400, %v396
    %v533 = vpack.c.b16 %v401, %v397
    %v534 = vpack.c.b16 %v406, %v402
    %v535 = vpack.c.b16 %v407, %v403
    %v536 = vpack.c.b16 %v408, %v404
    %v537 = vpack.c.b16 %v409, %v405
    %v538 = vpack.c.b16 %v414, %v410
    %v539 = vpack.c.b16 %v415, %v411
    %v540 = vpack.c.b16 %v416, %v412
    %v541 = vpack.c.b16 %v417, %v413
    %v542 = vpack.c.b16 %v422, %v418
    %v543 = vpack.c.b16 %v423, %v419
    %v544 = vpack.c.b16 %v424, %v420
    %v545 = vpack.c.b16 %v425, %v421
    %v546 = vpack.c.b16 %v430, %v426
    %v547 = vpack.c.b16 %v431, %v427
    %v548 = vpack.c.b16 %v432, %v428
    %v549 = vpack.c.b16 %v433, %v429
    %v550 = vpack.c.b16 %v438, %v434
    %v551 = vpack.c.b16 %v439, %v435
    %v552 = vpack.c.b16 %v440, %v436
    %v553 = vpack.c.b16 %v441, %v437
    %v554 = vpack.c.b16 %v446, %v442
    %v555 = vpack.c.b16 %v447, %v443
    %v556 = vpack.c.b16 %v448, %v444
    %v557 = vpack.c.b16 %v449, %v445
    %v558 = vpack.c.b16 %v454, %v450
    %v559 = vpack.c.b16 %v455, %v451
    %v560 = vpack.c.b16 %v456, %v452
    %v561 = vpack.c.b16 %v457, %v453
    %v562 = vpack.c.b16 %v462, %v458
    %v563 = vpack.c.b16 %v463, %v459
    %v564 = vpack.c.b16 %v464, %v460
    %v565 = vpack.c.b16 %v465, %v461
    %v566 = vpack.c.b16 %v470, %v466
    %v567 = vpack.c.b16 %v471, %v467
    %v568 = vpack.c.b16 %v472, %v468
    %v569 = vpack.c.b16 %v473, %v469
    %v570 = vpack.c.b16 %v478, %v474
    %v571 = vpack.c.b16 %v479, %v475
    %v572 = vpack.c.b16 %v480, %v476
    %v573 = vpack.c.b16 %v481, %v477
    %v574 = vpack.c.b16 %v486, %v482
    %v575 = vpack.c.b16 %v487, %v483
    %v576 = vpack.c.b16 %v488, %v484
    %v577 = vpack.c.b16 %v489, %v485
    %v578 = vpack.c.b16 %v494, %v490
    %v579 = vpack.c.b16 %v495, %v491
    %v580 = vpack.c.b16 %v496, %v492
    %v581 = vpack.c.b16 %v497, %v493
    %v582 = vpack.c.b16 %v502, %v498
    %v583 = vpack.c.b16 %v503, %v499
    %v584 = vpack.c.b16 %v504, %v500
    %v585 = vpack.c.b16 %v505, %v501
    %vm666 = vcmask 523264
    %v668 = vsel %vm666, %v256, 0
    %670 = vmatpush.bf16.msra.mxu0 %v534
    %671 = vmatpush.bf16.msra.mxu0 %v530
    %672 = vmatpush.bf16.msra.mxu0 %v526
    %673 = vmatpush.bf16.msra.mxu0 %v522
    %674 = vmatpush.bf16.msra.mxu0 %v518
    %675 = vmatpush.bf16.msra.mxu0 %v514
    %676 = vmatpush.bf16.msra.mxu0 %v510
    %677 = vmatpush.bf16.msra.mxu0 %v506
    %678 = vmatmul.bf16.gmra.mxu0 %v254
    %v679 = vpop.f32.mrf.mxu0
    %v680 = vadd.f32 %v258, %v679
    %v681 = vpop.f32.mrf.mxu0
    %682 = vdwg.mxu0
    %683 = vmatpush.bf16.msra.mxu0 %v566
    %684 = vmatpush.bf16.msra.mxu0 %v562
    %685 = vmatpush.bf16.msra.mxu0 %v558
    %686 = vmatpush.bf16.msra.mxu0 %v554
    %687 = vmatpush.bf16.msra.mxu0 %v550
    %688 = vmatpush.bf16.msra.mxu0 %v546
    %689 = vmatpush.bf16.msra.mxu0 %v542
    %690 = vmatpush.bf16.msra.mxu0 %v538
    %691 = vmatmul.bf16.gmra.mxu0 %v255
    %v692 = vpop.f32.mrf.mxu0
    %v693 = vadd.f32 %v680, %v692
    %v694 = vpop.f32.mrf.mxu0
    %695 = vdwg.mxu0
    %696 = vmatpush.bf16.msra.mxu0 0
    %697 = vmatpush.bf16.msra.mxu0 0
    %698 = vmatpush.bf16.msra.mxu0 0
    %699 = vmatpush.bf16.msra.mxu0 0
    %700 = vmatpush.bf16.msra.mxu0 %v582
    %701 = vmatpush.bf16.msra.mxu0 %v578
    %702 = vmatpush.bf16.msra.mxu0 %v574
    %703 = vmatpush.bf16.msra.mxu0 %v570
    %704 = vmatmul.bf16.gmra.mxu0 %v668
    %v705 = vpop.f32.mrf.mxu0
    %v706 = vadd.f32 %v693, %v705
    %v707 = vpop.f32.mrf.mxu0
    %708 = vdwg.mxu0
    %709 = vmatpush.bf16.msra.mxu0 %v535
    %710 = vmatpush.bf16.msra.mxu0 %v531
    %711 = vmatpush.bf16.msra.mxu0 %v527
    %712 = vmatpush.bf16.msra.mxu0 %v523
    %713 = vmatpush.bf16.msra.mxu0 %v519
    %714 = vmatpush.bf16.msra.mxu0 %v515
    %715 = vmatpush.bf16.msra.mxu0 %v511
    %716 = vmatpush.bf16.msra.mxu0 %v507
    %717 = vmatmul.bf16.gmra.mxu0 %v254
    %v718 = vpop.f32.mrf.mxu0
    %v719 = vadd.f32 %v259, %v718
    %v720 = vpop.f32.mrf.mxu0
    %721 = vdwg.mxu0
    %722 = vmatpush.bf16.msra.mxu0 %v567
    %723 = vmatpush.bf16.msra.mxu0 %v563
    %724 = vmatpush.bf16.msra.mxu0 %v559
    %725 = vmatpush.bf16.msra.mxu0 %v555
    %726 = vmatpush.bf16.msra.mxu0 %v551
    %727 = vmatpush.bf16.msra.mxu0 %v547
    %728 = vmatpush.bf16.msra.mxu0 %v543
    %729 = vmatpush.bf16.msra.mxu0 %v539
    %730 = vmatmul.bf16.gmra.mxu0 %v255
    %v731 = vpop.f32.mrf.mxu0
    %v732 = vadd.f32 %v719, %v731
    %v733 = vpop.f32.mrf.mxu0
    %734 = vdwg.mxu0
    %735 = vmatpush.bf16.msra.mxu0 0
    %736 = vmatpush.bf16.msra.mxu0 0
    %737 = vmatpush.bf16.msra.mxu0 0
    %738 = vmatpush.bf16.msra.mxu0 0
    %739 = vmatpush.bf16.msra.mxu0 %v583
    %740 = vmatpush.bf16.msra.mxu0 %v579
    %741 = vmatpush.bf16.msra.mxu0 %v575
    %742 = vmatpush.bf16.msra.mxu0 %v571
    %743 = vmatmul.bf16.gmra.mxu0 %v668
    %v744 = vpop.f32.mrf.mxu0
    %v745 = vadd.f32 %v732, %v744
    %v746 = vpop.f32.mrf.mxu0
    %747 = vdwg.mxu0
    %748 = vmatpush.bf16.msra.mxu0 %v536
    %749 = vmatpush.bf16.msra.mxu0 %v532
    %750 = vmatpush.bf16.msra.mxu0 %v528
    %751 = vmatpush.bf16.msra.mxu0 %v524
    %752 = vmatpush.bf16.msra.mxu0 %v520
    %753 = vmatpush.bf16.msra.mxu0 %v516
    %754 = vmatpush.bf16.msra.mxu0 %v512
    %755 = vmatpush.bf16.msra.mxu0 %v508
    %756 = vmatmul.bf16.gmra.mxu0 %v254
    %v757 = vpop.f32.mrf.mxu0
    %v758 = vadd.f32 %v260, %v757
    %v759 = vpop.f32.mrf.mxu0
    %760 = vdwg.mxu0
    %761 = vmatpush.bf16.msra.mxu0 %v568
    %762 = vmatpush.bf16.msra.mxu0 %v564
    %763 = vmatpush.bf16.msra.mxu0 %v560
    %764 = vmatpush.bf16.msra.mxu0 %v556
    %765 = vmatpush.bf16.msra.mxu0 %v552
    %766 = vmatpush.bf16.msra.mxu0 %v548
    %767 = vmatpush.bf16.msra.mxu0 %v544
    %768 = vmatpush.bf16.msra.mxu0 %v540
    %769 = vmatmul.bf16.gmra.mxu0 %v255
    %v770 = vpop.f32.mrf.mxu0
    %v771 = vadd.f32 %v758, %v770
    %v772 = vpop.f32.mrf.mxu0
    %773 = vdwg.mxu0
    %774 = vmatpush.bf16.msra.mxu0 0
    %775 = vmatpush.bf16.msra.mxu0 0
    %776 = vmatpush.bf16.msra.mxu0 0
    %777 = vmatpush.bf16.msra.mxu0 0
    %778 = vmatpush.bf16.msra.mxu0 %v584
    %779 = vmatpush.bf16.msra.mxu0 %v580
    %780 = vmatpush.bf16.msra.mxu0 %v576
    %781 = vmatpush.bf16.msra.mxu0 %v572
    %782 = vmatmul.bf16.gmra.mxu0 %v668
    %v783 = vpop.f32.mrf.mxu0
    %v784 = vadd.f32 %v771, %v783
    %v785 = vpop.f32.mrf.mxu0
    %786 = vdwg.mxu0
    %787 = vmatpush.bf16.msra.mxu0 %v537
    %788 = vmatpush.bf16.msra.mxu0 %v533
    %789 = vmatpush.bf16.msra.mxu0 %v529
    %790 = vmatpush.bf16.msra.mxu0 %v525
    %791 = vmatpush.bf16.msra.mxu0 %v521
    %792 = vmatpush.bf16.msra.mxu0 %v517
    %793 = vmatpush.bf16.msra.mxu0 %v513
    %794 = vmatpush.bf16.msra.mxu0 %v509
    %795 = vmatmul.bf16.gmra.mxu0 %v254
    %v796 = vpop.f32.mrf.mxu0
    %v797 = vadd.f32 %v261, %v796
    %v798 = vpop.f32.mrf.mxu0
    %799 = vdwg.mxu0
    %800 = vmatpush.bf16.msra.mxu0 %v569
    %801 = vmatpush.bf16.msra.mxu0 %v565
    %802 = vmatpush.bf16.msra.mxu0 %v561
    %803 = vmatpush.bf16.msra.mxu0 %v557
    %804 = vmatpush.bf16.msra.mxu0 %v553
    %805 = vmatpush.bf16.msra.mxu0 %v549
    %806 = vmatpush.bf16.msra.mxu0 %v545
    %807 = vmatpush.bf16.msra.mxu0 %v541
    %808 = vmatmul.bf16.gmra.mxu0 %v255
    %v809 = vpop.f32.mrf.mxu0
    %v810 = vadd.f32 %v797, %v809
    %v811 = vpop.f32.mrf.mxu0
    %812 = vdwg.mxu0
    %813 = vmatpush.bf16.msra.mxu0 0
    %814 = vmatpush.bf16.msra.mxu0 0
    %815 = vmatpush.bf16.msra.mxu0 0
    %816 = vmatpush.bf16.msra.mxu0 0
    %817 = vmatpush.bf16.msra.mxu0 %v585
    %818 = vmatpush.bf16.msra.mxu0 %v581
    %819 = vmatpush.bf16.msra.mxu0 %v577
    %820 = vmatpush.bf16.msra.mxu0 %v573
    %821 = vmatmul.bf16.gmra.mxu0 %v668
    %v822 = vpop.f32.mrf.mxu0
    %v823 = vadd.f32 %v810, %v822
    %v824 = vpop.f32.mrf.mxu0
    %825 = vdwg.mxu0
    %v826 = vmax.f32 %v706, 0.0
    %v827 = vmax.f32 %v745, 0.0
    %v828 = vmax.f32 %v784, 0.0
    %v829 = vmax.f32 %v823, 0.0
    %v830 = vld [vmem:[#allocation7] sm:$0xff]
    %v831 = vld [vmem:[#allocation7 + $0x8] sm:$0xff]
    %v832 = vld [vmem:[#allocation7 + $0x10] sm:$0xff]
    %v833 = vld [vmem:[#allocation7 + $0x18] sm:$0xff]
    %v834 = vld [vmem:[#allocation7 + $0x20] sm:$0xff]
    %v835 = vld [vmem:[#allocation7 + $0x28] sm:$0xff]
    %v836 = vld [vmem:[#allocation7 + $0x30] sm:$0xff]
    %v837 = vld [vmem:[#allocation7 + $0x38] sm:$0xff]
    %v838 = vld [vmem:[#allocation7 + $0x40] sm:$0xff]
    %v839 = vld [vmem:[#allocation7 + $0x48] sm:$0xff]
    %v840 = vld [vmem:[#allocation7 + $0x50] sm:$0xff]
    %v841 = vld [vmem:[#allocation7 + $0x58] sm:$0xff]
    %v842 = vld [vmem:[#allocation7 + $0x60] sm:$0xff]
    %v843 = vld [vmem:[#allocation7 + $0x68] sm:$0xff]
    %v844 = vld [vmem:[#allocation7 + $0x70] sm:$0xff]
    %v845 = vld [vmem:[#allocation7 + $0x78] sm:$0xff]
    %v846 = vld [vmem:[#allocation7 + $0x80] sm:$0xff]
    %v847 = vld [vmem:[#allocation7 + $0x88] sm:$0xff]
    %v848 = vld [vmem:[#allocation7 + $0x90] sm:$0xff]
    %v849 = vld [vmem:[#allocation7 + $0x98] sm:$0xff]
    %v850 = vld [vmem:[#allocation7 + $0xa0] sm:$0xff]
    %v851 = vld [vmem:[#allocation7 + $0xa8] sm:$0xff]
    %v852 = vld [vmem:[#allocation7 + $0xb0] sm:$0xff]
    %v853 = vld [vmem:[#allocation7 + $0xb8] sm:$0xff]
    %v854 = vld [vmem:[#allocation7 + $0xc0] sm:$0xff]
    %v855 = vld [vmem:[#allocation7 + $0xc8] sm:$0xff]
    %v856 = vld [vmem:[#allocation7 + $0xd0] sm:$0xff]
    %v857 = vld [vmem:[#allocation7 + $0xd8] sm:$0xff]
    %v858 = vld [vmem:[#allocation7 + $0xe0] sm:$0xff]
    %v859 = vld [vmem:[#allocation7 + $0xe8] sm:$0xff]
    %v860 = vld [vmem:[#allocation7 + $0xf0] sm:$0xff]
    %v861 = vld [vmem:[#allocation7 + $0xf8] sm:$0xff]
    %v862 = vld [vmem:[#allocation7 + $0x100] sm:$0xff]
    %v863 = vld [vmem:[#allocation7 + $0x108] sm:$0xff]
    %v864 = vld [vmem:[#allocation7 + $0x110] sm:$0xff]
    %v865 = vld [vmem:[#allocation7 + $0x118] sm:$0xff]
    %v866 = vld [vmem:[#allocation7 + $0x120] sm:$0xff]
    %v867 = vld [vmem:[#allocation7 + $0x128] sm:$0xff]
    %v868 = vld [vmem:[#allocation7 + $0x130] sm:$0xff]
    %v869 = vld [vmem:[#allocation7 + $0x138] sm:$0xff]
    %v870 = vld [vmem:[#allocation7 + $0x140] sm:$0xff]
    %v871 = vld [vmem:[#allocation7 + $0x148] sm:$0xff]
    %v872 = vld [vmem:[#allocation7 + $0x150] sm:$0xff]
    %v873 = vld [vmem:[#allocation7 + $0x158] sm:$0xff]
    %v874 = vld [vmem:[#allocation7 + $0x160] sm:$0xff]
    %v875 = vld [vmem:[#allocation7 + $0x168] sm:$0xff]
    %v876 = vld [vmem:[#allocation7 + $0x170] sm:$0xff]
    %v877 = vld [vmem:[#allocation7 + $0x178] sm:$0xff]
    %v878 = vld [vmem:[#allocation7 + $0x180] sm:$0xff]
    %v879 = vld [vmem:[#allocation7 + $0x188] sm:$0xff]
    %v880 = vld [vmem:[#allocation7 + $0x190] sm:$0xff]
    %v881 = vld [vmem:[#allocation7 + $0x198] sm:$0xff]
    %v882 = vld [vmem:[#allocation7 + $0x1a0] sm:$0xff]
    %v883 = vld [vmem:[#allocation7 + $0x1a8] sm:$0xff]
    %v884 = vld [vmem:[#allocation7 + $0x1b0] sm:$0xff]
    %v885 = vld [vmem:[#allocation7 + $0x1b8] sm:$0xff]
    %v886 = vld [vmem:[#allocation7 + $0x1c0] sm:$0xff]
    %v887 = vld [vmem:[#allocation7 + $0x1c8] sm:$0xff]
    %v888 = vld [vmem:[#allocation7 + $0x1d0] sm:$0xff]
    %v889 = vld [vmem:[#allocation7 + $0x1d8] sm:$0xff]
    %v890 = vld [vmem:[#allocation7 + $0x1e0] sm:$0xff]
    %v891 = vld [vmem:[#allocation7 + $0x1e8] sm:$0xff]
    %v892 = vld [vmem:[#allocation7 + $0x1f0] sm:$0xff]
    %v893 = vld [vmem:[#allocation7 + $0x1f8] sm:$0xff]
    %v894 = vld [vmem:[#allocation7 + $0x200] sm:$0xff]
    %v895 = vld [vmem:[#allocation7 + $0x208] sm:$0xff]
    %v896 = vld [vmem:[#allocation7 + $0x210] sm:$0xff]
    %v897 = vld [vmem:[#allocation7 + $0x218] sm:$0xff]
    %v898 = vld [vmem:[#allocation7 + $0x220] sm:$0xff]
    %v899 = vld [vmem:[#allocation7 + $0x228] sm:$0xff]
    %v900 = vld [vmem:[#allocation7 + $0x230] sm:$0xff]
    %v901 = vld [vmem:[#allocation7 + $0x238] sm:$0xff]
    %v902 = vld [vmem:[#allocation7 + $0x240] sm:$0xff]
    %v903 = vld [vmem:[#allocation7 + $0x248] sm:$0xff]
    %v904 = vld [vmem:[#allocation7 + $0x250] sm:$0xff]
    %v905 = vld [vmem:[#allocation7 + $0x258] sm:$0xff]
    %v906 = vld [vmem:[#allocation7 + $0x260] sm:$0xff]
    %v907 = vld [vmem:[#allocation7 + $0x268] sm:$0xff]
    %v908 = vld [vmem:[#allocation7 + $0x270] sm:$0xff]
    %v909 = vld [vmem:[#allocation7 + $0x278] sm:$0xff]
    %v910 = vld [vmem:[#allocation7 + $0x280] sm:$0xff]
    %v911 = vld [vmem:[#allocation7 + $0x288] sm:$0xff]
    %v912 = vld [vmem:[#allocation7 + $0x290] sm:$0xff]
    %v913 = vld [vmem:[#allocation7 + $0x298] sm:$0xff]
    %v914 = vld [vmem:[#allocation7 + $0x2a0] sm:$0xff]
    %v915 = vld [vmem:[#allocation7 + $0x2a8] sm:$0xff]
    %v916 = vld [vmem:[#allocation7 + $0x2b0] sm:$0xff]
    %v917 = vld [vmem:[#allocation7 + $0x2b8] sm:$0xff]
    %v918 = vld [vmem:[#allocation7 + $0x2c0] sm:$0xff]
    %v919 = vld [vmem:[#allocation7 + $0x2c8] sm:$0xff]
    %v920 = vld [vmem:[#allocation7 + $0x2d0] sm:$0xff]
    %v921 = vld [vmem:[#allocation7 + $0x2d8] sm:$0xff]
    %v922 = vld [vmem:[#allocation7 + $0x2e0] sm:$0xff]
    %v923 = vld [vmem:[#allocation7 + $0x2e8] sm:$0xff]
    %v924 = vld [vmem:[#allocation7 + $0x2f0] sm:$0xff]
    %v925 = vld [vmem:[#allocation7 + $0x2f8] sm:$0xff]
    %v926 = vld [vmem:[#allocation7 + $0x300] sm:$0xff]
    %v927 = vld [vmem:[#allocation7 + $0x308] sm:$0xff]
    %v928 = vld [vmem:[#allocation7 + $0x310] sm:$0xff]
    %v929 = vld [vmem:[#allocation7 + $0x318] sm:$0xff]
    %v930 = vld [vmem:[#allocation7 + $0x320] sm:$0xff]
    %v931 = vld [vmem:[#allocation7 + $0x328] sm:$0xff]
    %v932 = vld [vmem:[#allocation7 + $0x330] sm:$0xff]
    %v933 = vld [vmem:[#allocation7 + $0x338] sm:$0xff]
    %v934 = vld [vmem:[#allocation7 + $0x340] sm:$0xff]
    %v935 = vld [vmem:[#allocation7 + $0x348] sm:$0xff]
    %v936 = vld [vmem:[#allocation7 + $0x350] sm:$0xff]
    %v937 = vld [vmem:[#allocation7 + $0x358] sm:$0xff]
    %v938 = vld [vmem:[#allocation7 + $0x360] sm:$0xff]
    %v939 = vld [vmem:[#allocation7 + $0x368] sm:$0xff]
    %v940 = vld [vmem:[#allocation7 + $0x370] sm:$0xff]
    %v941 = vld [vmem:[#allocation7 + $0x378] sm:$0xff]
    %v942 = vld [vmem:[#allocation7 + $0x380] sm:$0xff]
    %v943 = vld [vmem:[#allocation7 + $0x388] sm:$0xff]
    %v944 = vld [vmem:[#allocation7 + $0x390] sm:$0xff]
    %v945 = vld [vmem:[#allocation7 + $0x398] sm:$0xff]
    %v946 = vld [vmem:[#allocation7 + $0x3a0] sm:$0xff]
    %v947 = vld [vmem:[#allocation7 + $0x3a8] sm:$0xff]
    %v948 = vld [vmem:[#allocation7 + $0x3b0] sm:$0xff]
    %v949 = vld [vmem:[#allocation7 + $0x3b8] sm:$0xff]
    %v950 = vld [vmem:[#allocation7 + $0x3c0] sm:$0xff]
    %v951 = vld [vmem:[#allocation7 + $0x3c8] sm:$0xff]
    %v952 = vld [vmem:[#allocation7 + $0x3d0] sm:$0xff]
    %v953 = vld [vmem:[#allocation7 + $0x3d8] sm:$0xff]
    %v954 = vld [vmem:[#allocation7 + $0x3e0] sm:$0xff]
    %v955 = vld [vmem:[#allocation7 + $0x3e8] sm:$0xff]
    %v956 = vld [vmem:[#allocation7 + $0x3f0] sm:$0xff]
    %v957 = vld [vmem:[#allocation7 + $0x3f8] sm:$0xff]
    %v958 = vld [vmem:[#allocation16 + $0x4] sm:$0xf]
    %v959 = vpack.c.bf16 %v826, %v826
    %v960 = vpack.c.bf16 %v827, %v827
    %v961 = vpack.c.bf16 %v828, %v828
    %v962 = vpack.c.bf16 %v829, %v829
    %v964 = vperm.slane %v958, 0
    %v965 = vperm.slane %v958, 1
    %v966 = vperm.slane %v958, 2
    %v967 = vperm.slane %v958, 3
    %v1100 = vunpack.c.l.b16 %v830
    %v1101 = vunpack.c.h.b16 %v830
    %v1102 = vunpack.c.l.b16 %v831
    %v1103 = vunpack.c.h.b16 %v831
    %v1104 = vunpack.c.l.b16 %v832
    %v1105 = vunpack.c.h.b16 %v832
    %v1106 = vunpack.c.l.b16 %v833
    %v1107 = vunpack.c.h.b16 %v833
    %v1108 = vunpack.c.l.b16 %v834
    %v1109 = vunpack.c.h.b16 %v834
    %v1110 = vunpack.c.l.b16 %v835
    %v1111 = vunpack.c.h.b16 %v835
    %v1112 = vunpack.c.l.b16 %v836
    %v1113 = vunpack.c.h.b16 %v836
    %v1114 = vunpack.c.l.b16 %v837
    %v1115 = vunpack.c.h.b16 %v837
    %v1116 = vunpack.c.l.b16 %v838
    %v1117 = vunpack.c.h.b16 %v838
    %v1118 = vunpack.c.l.b16 %v839
    %v1119 = vunpack.c.h.b16 %v839
    %v1120 = vunpack.c.l.b16 %v840
    %v1121 = vunpack.c.h.b16 %v840
    %v1122 = vunpack.c.l.b16 %v841
    %v1123 = vunpack.c.h.b16 %v841
    %v1124 = vunpack.c.l.b16 %v842
    %v1125 = vunpack.c.h.b16 %v842
    %v1126 = vunpack.c.l.b16 %v843
    %v1127 = vunpack.c.h.b16 %v843
    %v1128 = vunpack.c.l.b16 %v844
    %v1129 = vunpack.c.h.b16 %v844
    %v1130 = vunpack.c.l.b16 %v845
    %v1131 = vunpack.c.h.b16 %v845
    %v1132 = vunpack.c.l.b16 %v846
    %v1133 = vunpack.c.h.b16 %v846
    %v1134 = vunpack.c.l.b16 %v847
    %v1135 = vunpack.c.h.b16 %v847
    %v1136 = vunpack.c.l.b16 %v848
    %v1137 = vunpack.c.h.b16 %v848
    %v1138 = vunpack.c.l.b16 %v849
    %v1139 = vunpack.c.h.b16 %v849
    %v1140 = vunpack.c.l.b16 %v850
    %v1141 = vunpack.c.h.b16 %v850
    %v1142 = vunpack.c.l.b16 %v851
    %v1143 = vunpack.c.h.b16 %v851
    %v1144 = vunpack.c.l.b16 %v852
    %v1145 = vunpack.c.h.b16 %v852
    %v1146 = vunpack.c.l.b16 %v853
    %v1147 = vunpack.c.h.b16 %v853
    %v1148 = vunpack.c.l.b16 %v854
    %v1149 = vunpack.c.h.b16 %v854
    %v1150 = vunpack.c.l.b16 %v855
    %v1151 = vunpack.c.h.b16 %v855
    %v1152 = vunpack.c.l.b16 %v856
    %v1153 = vunpack.c.h.b16 %v856
    %v1154 = vunpack.c.l.b16 %v857
    %v1155 = vunpack.c.h.b16 %v857
    %v1156 = vunpack.c.l.b16 %v858
    %v1157 = vunpack.c.h.b16 %v858
    %v1158 = vunpack.c.l.b16 %v859
    %v1159 = vunpack.c.h.b16 %v859
    %v1160 = vunpack.c.l.b16 %v860
    %v1161 = vunpack.c.h.b16 %v860
    %v1162 = vunpack.c.l.b16 %v861
    %v1163 = vunpack.c.h.b16 %v861
    %v1164 = vunpack.c.l.b16 %v862
    %v1165 = vunpack.c.h.b16 %v862
    %v1166 = vunpack.c.l.b16 %v863
    %v1167 = vunpack.c.h.b16 %v863
    %v1168 = vunpack.c.l.b16 %v864
    %v1169 = vunpack.c.h.b16 %v864
    %v1170 = vunpack.c.l.b16 %v865
    %v1171 = vunpack.c.h.b16 %v865
    %v1172 = vunpack.c.l.b16 %v866
    %v1173 = vunpack.c.h.b16 %v866
    %v1174 = vunpack.c.l.b16 %v867
    %v1175 = vunpack.c.h.b16 %v867
    %v1176 = vunpack.c.l.b16 %v868
    %v1177 = vunpack.c.h.b16 %v868
    %v1178 = vunpack.c.l.b16 %v869
    %v1179 = vunpack.c.h.b16 %v869
    %v1180 = vunpack.c.l.b16 %v870
    %v1181 = vunpack.c.h.b16 %v870
    %v1182 = vunpack.c.l.b16 %v871
    %v1183 = vunpack.c.h.b16 %v871
    %v1184 = vunpack.c.l.b16 %v872
    %v1185 = vunpack.c.h.b16 %v872
    %v1186 = vunpack.c.l.b16 %v873
    %v1187 = vunpack.c.h.b16 %v873
    %v1188 = vunpack.c.l.b16 %v874
    %v1189 = vunpack.c.h.b16 %v874
    %v1190 = vunpack.c.l.b16 %v875
    %v1191 = vunpack.c.h.b16 %v875
    %v1192 = vunpack.c.l.b16 %v876
    %v1193 = vunpack.c.h.b16 %v876
    %v1194 = vunpack.c.l.b16 %v877
    %v1195 = vunpack.c.h.b16 %v877
    %v1196 = vunpack.c.l.b16 %v878
    %v1197 = vunpack.c.h.b16 %v878
    %v1198 = vunpack.c.l.b16 %v879
    %v1199 = vunpack.c.h.b16 %v879
    %v1200 = vunpack.c.l.b16 %v880
    %v1201 = vunpack.c.h.b16 %v880
    %v1202 = vunpack.c.l.b16 %v881
    %v1203 = vunpack.c.h.b16 %v881
    %v1204 = vunpack.c.l.b16 %v882
    %v1205 = vunpack.c.h.b16 %v882
    %v1206 = vunpack.c.l.b16 %v883
    %v1207 = vunpack.c.h.b16 %v883
    %v1208 = vunpack.c.l.b16 %v884
    %v1209 = vunpack.c.h.b16 %v884
    %v1210 = vunpack.c.l.b16 %v885
    %v1211 = vunpack.c.h.b16 %v885
    %v1212 = vunpack.c.l.b16 %v886
    %v1213 = vunpack.c.h.b16 %v886
    %v1214 = vunpack.c.l.b16 %v887
    %v1215 = vunpack.c.h.b16 %v887
    %v1216 = vunpack.c.l.b16 %v888
    %v1217 = vunpack.c.h.b16 %v888
    %v1218 = vunpack.c.l.b16 %v889
    %v1219 = vunpack.c.h.b16 %v889
    %v1220 = vunpack.c.l.b16 %v890
    %v1221 = vunpack.c.h.b16 %v890
    %v1222 = vunpack.c.l.b16 %v891
    %v1223 = vunpack.c.h.b16 %v891
    %v1224 = vunpack.c.l.b16 %v892
    %v1225 = vunpack.c.h.b16 %v892
    %v1226 = vunpack.c.l.b16 %v893
    %v1227 = vunpack.c.h.b16 %v893
    %v1228 = vunpack.c.l.b16 %v894
    %v1229 = vunpack.c.h.b16 %v894
    %v1230 = vunpack.c.l.b16 %v895
    %v1231 = vunpack.c.h.b16 %v895
    %v1232 = vunpack.c.l.b16 %v896
    %v1233 = vunpack.c.h.b16 %v896
    %v1234 = vunpack.c.l.b16 %v897
    %v1235 = vunpack.c.h.b16 %v897
    %v1236 = vunpack.c.l.b16 %v898
    %v1237 = vunpack.c.h.b16 %v898
    %v1238 = vunpack.c.l.b16 %v899
    %v1239 = vunpack.c.h.b16 %v899
    %v1240 = vunpack.c.l.b16 %v900
    %v1241 = vunpack.c.h.b16 %v900
    %v1242 = vunpack.c.l.b16 %v901
    %v1243 = vunpack.c.h.b16 %v901
    %v1244 = vunpack.c.l.b16 %v902
    %v1245 = vunpack.c.h.b16 %v902
    %v1246 = vunpack.c.l.b16 %v903
    %v1247 = vunpack.c.h.b16 %v903
    %v1248 = vunpack.c.l.b16 %v904
    %v1249 = vunpack.c.h.b16 %v904
    %v1250 = vunpack.c.l.b16 %v905
    %v1251 = vunpack.c.h.b16 %v905
    %v1252 = vunpack.c.l.b16 %v906
    %v1253 = vunpack.c.h.b16 %v906
    %v1254 = vunpack.c.l.b16 %v907
    %v1255 = vunpack.c.h.b16 %v907
    %v1256 = vunpack.c.l.b16 %v908
    %v1257 = vunpack.c.h.b16 %v908
    %v1258 = vunpack.c.l.b16 %v909
    %v1259 = vunpack.c.h.b16 %v909
    %v1260 = vunpack.c.l.b16 %v910
    %v1261 = vunpack.c.h.b16 %v910
    %v1262 = vunpack.c.l.b16 %v911
    %v1263 = vunpack.c.h.b16 %v911
    %v1264 = vunpack.c.l.b16 %v912
    %v1265 = vunpack.c.h.b16 %v912
    %v1266 = vunpack.c.l.b16 %v913
    %v1267 = vunpack.c.h.b16 %v913
    %v1268 = vunpack.c.l.b16 %v914
    %v1269 = vunpack.c.h.b16 %v914
    %v1270 = vunpack.c.l.b16 %v915
    %v1271 = vunpack.c.h.b16 %v915
    %v1272 = vunpack.c.l.b16 %v916
    %v1273 = vunpack.c.h.b16 %v916
    %v1274 = vunpack.c.l.b16 %v917
    %v1275 = vunpack.c.h.b16 %v917
    %v1276 = vunpack.c.l.b16 %v918
    %v1277 = vunpack.c.h.b16 %v918
    %v1278 = vunpack.c.l.b16 %v919
    %v1279 = vunpack.c.h.b16 %v919
    %v1280 = vunpack.c.l.b16 %v920
    %v1281 = vunpack.c.h.b16 %v920
    %v1282 = vunpack.c.l.b16 %v921
    %v1283 = vunpack.c.h.b16 %v921
    %v1284 = vunpack.c.l.b16 %v922
    %v1285 = vunpack.c.h.b16 %v922
    %v1286 = vunpack.c.l.b16 %v923
    %v1287 = vunpack.c.h.b16 %v923
    %v1288 = vunpack.c.l.b16 %v924
    %v1289 = vunpack.c.h.b16 %v924
    %v1290 = vunpack.c.l.b16 %v925
    %v1291 = vunpack.c.h.b16 %v925
    %v1292 = vunpack.c.l.b16 %v926
    %v1293 = vunpack.c.h.b16 %v926
    %v1294 = vunpack.c.l.b16 %v927
    %v1295 = vunpack.c.h.b16 %v927
    %v1296 = vunpack.c.l.b16 %v928
    %v1297 = vunpack.c.h.b16 %v928
    %v1298 = vunpack.c.l.b16 %v929
    %v1299 = vunpack.c.h.b16 %v929
    %v1300 = vunpack.c.l.b16 %v930
    %v1301 = vunpack.c.h.b16 %v930
    %v1302 = vunpack.c.l.b16 %v931
    %v1303 = vunpack.c.h.b16 %v931
    %v1304 = vunpack.c.l.b16 %v932
    %v1305 = vunpack.c.h.b16 %v932
    %v1306 = vunpack.c.l.b16 %v933
    %v1307 = vunpack.c.h.b16 %v933
    %v1308 = vunpack.c.l.b16 %v934
    %v1309 = vunpack.c.h.b16 %v934
    %v1310 = vunpack.c.l.b16 %v935
    %v1311 = vunpack.c.h.b16 %v935
    %v1312 = vunpack.c.l.b16 %v936
    %v1313 = vunpack.c.h.b16 %v936
    %v1314 = vunpack.c.l.b16 %v937
    %v1315 = vunpack.c.h.b16 %v937
    %v1316 = vunpack.c.l.b16 %v938
    %v1317 = vunpack.c.h.b16 %v938
    %v1318 = vunpack.c.l.b16 %v939
    %v1319 = vunpack.c.h.b16 %v939
    %v1320 = vunpack.c.l.b16 %v940
    %v1321 = vunpack.c.h.b16 %v940
    %v1322 = vunpack.c.l.b16 %v941
    %v1323 = vunpack.c.h.b16 %v941
    %v1324 = vunpack.c.l.b16 %v942
    %v1325 = vunpack.c.h.b16 %v942
    %v1326 = vunpack.c.l.b16 %v943
    %v1327 = vunpack.c.h.b16 %v943
    %v1328 = vunpack.c.l.b16 %v944
    %v1329 = vunpack.c.h.b16 %v944
    %v1330 = vunpack.c.l.b16 %v945
    %v1331 = vunpack.c.h.b16 %v945
    %v1332 = vunpack.c.l.b16 %v946
    %v1333 = vunpack.c.h.b16 %v946
    %v1334 = vunpack.c.l.b16 %v947
    %v1335 = vunpack.c.h.b16 %v947
    %v1336 = vunpack.c.l.b16 %v948
    %v1337 = vunpack.c.h.b16 %v948
    %v1338 = vunpack.c.l.b16 %v949
    %v1339 = vunpack.c.h.b16 %v949
    %v1340 = vunpack.c.l.b16 %v950
    %v1341 = vunpack.c.h.b16 %v950
    %v1342 = vunpack.c.l.b16 %v951
    %v1343 = vunpack.c.h.b16 %v951
    %v1344 = vunpack.c.l.b16 %v952
    %v1345 = vunpack.c.h.b16 %v952
    %v1346 = vunpack.c.l.b16 %v953
    %v1347 = vunpack.c.h.b16 %v953
    %v1348 = vunpack.c.l.b16 %v954
    %v1349 = vunpack.c.h.b16 %v954
    %v1350 = vunpack.c.l.b16 %v955
    %v1351 = vunpack.c.h.b16 %v955
    %v1352 = vunpack.c.l.b16 %v956
    %v1353 = vunpack.c.h.b16 %v956
    %v1354 = vunpack.c.l.b16 %v957
    %v1355 = vunpack.c.h.b16 %v957
    %v1356 = vpack.c.b16 %v1104, %v1100
    %v1357 = vpack.c.b16 %v1105, %v1101
    %v1358 = vpack.c.b16 %v1106, %v1102
    %v1359 = vpack.c.b16 %v1107, %v1103
    %v1360 = vpack.c.b16 %v1112, %v1108
    %v1361 = vpack.c.b16 %v1113, %v1109
    %v1362 = vpack.c.b16 %v1114, %v1110
    %v1363 = vpack.c.b16 %v1115, %v1111
    %v1364 = vpack.c.b16 %v1120, %v1116
    %v1365 = vpack.c.b16 %v1121, %v1117
    %v1366 = vpack.c.b16 %v1122, %v1118
    %v1367 = vpack.c.b16 %v1123, %v1119
    %v1368 = vpack.c.b16 %v1128, %v1124
    %v1369 = vpack.c.b16 %v1129, %v1125
    %v1370 = vpack.c.b16 %v1130, %v1126
    %v1371 = vpack.c.b16 %v1131, %v1127
    %v1372 = vpack.c.b16 %v1136, %v1132
    %v1373 = vpack.c.b16 %v1137, %v1133
    %v1374 = vpack.c.b16 %v1138, %v1134
    %v1375 = vpack.c.b16 %v1139, %v1135
    %v1376 = vpack.c.b16 %v1144, %v1140
    %v1377 = vpack.c.b16 %v1145, %v1141
    %v1378 = vpack.c.b16 %v1146, %v1142
    %v1379 = vpack.c.b16 %v1147, %v1143
    %v1380 = vpack.c.b16 %v1152, %v1148
    %v1381 = vpack.c.b16 %v1153, %v1149
    %v1382 = vpack.c.b16 %v1154, %v1150
    %v1383 = vpack.c.b16 %v1155, %v1151
    %v1384 = vpack.c.b16 %v1160, %v1156
    %v1385 = vpack.c.b16 %v1161, %v1157
    %v1386 = vpack.c.b16 %v1162, %v1158
    %v1387 = vpack.c.b16 %v1163, %v1159
    %v1388 = vpack.c.b16 %v1168, %v1164
    %v1389 = vpack.c.b16 %v1169, %v1165
    %v1390 = vpack.c.b16 %v1170, %v1166
    %v1391 = vpack.c.b16 %v1171, %v1167
    %v1392 = vpack.c.b16 %v1176, %v1172
    %v1393 = vpack.c.b16 %v1177, %v1173
    %v1394 = vpack.c.b16 %v1178, %v1174
    %v1395 = vpack.c.b16 %v1179, %v1175
    %v1396 = vpack.c.b16 %v1184, %v1180
    %v1397 = vpack.c.b16 %v1185, %v1181
    %v1398 = vpack.c.b16 %v1186, %v1182
    %v1399 = vpack.c.b16 %v1187, %v1183
    %v1400 = vpack.c.b16 %v1192, %v1188
    %v1401 = vpack.c.b16 %v1193, %v1189
    %v1402 = vpack.c.b16 %v1194, %v1190
    %v1403 = vpack.c.b16 %v1195, %v1191
    %v1404 = vpack.c.b16 %v1200, %v1196
    %v1405 = vpack.c.b16 %v1201, %v1197
    %v1406 = vpack.c.b16 %v1202, %v1198
    %v1407 = vpack.c.b16 %v1203, %v1199
    %v1408 = vpack.c.b16 %v1208, %v1204
    %v1409 = vpack.c.b16 %v1209, %v1205
    %v1410 = vpack.c.b16 %v1210, %v1206
    %v1411 = vpack.c.b16 %v1211, %v1207
    %v1412 = vpack.c.b16 %v1216, %v1212
    %v1413 = vpack.c.b16 %v1217, %v1213
    %v1414 = vpack.c.b16 %v1218, %v1214
    %v1415 = vpack.c.b16 %v1219, %v1215
    %v1416 = vpack.c.b16 %v1224, %v1220
    %v1417 = vpack.c.b16 %v1225, %v1221
    %v1418 = vpack.c.b16 %v1226, %v1222
    %v1419 = vpack.c.b16 %v1227, %v1223
    %v1420 = vpack.c.b16 %v1232, %v1228
    %v1421 = vpack.c.b16 %v1233, %v1229
    %v1422 = vpack.c.b16 %v1234, %v1230
    %v1423 = vpack.c.b16 %v1235, %v1231
    %v1424 = vpack.c.b16 %v1240, %v1236
    %v1425 = vpack.c.b16 %v1241, %v1237
    %v1426 = vpack.c.b16 %v1242, %v1238
    %v1427 = vpack.c.b16 %v1243, %v1239
    %v1428 = vpack.c.b16 %v1248, %v1244
    %v1429 = vpack.c.b16 %v1249, %v1245
    %v1430 = vpack.c.b16 %v1250, %v1246
    %v1431 = vpack.c.b16 %v1251, %v1247
    %v1432 = vpack.c.b16 %v1256, %v1252
    %v1433 = vpack.c.b16 %v1257, %v1253
    %v1434 = vpack.c.b16 %v1258, %v1254
    %v1435 = vpack.c.b16 %v1259, %v1255
    %v1436 = vpack.c.b16 %v1264, %v1260
    %v1437 = vpack.c.b16 %v1265, %v1261
    %v1438 = vpack.c.b16 %v1266, %v1262
    %v1439 = vpack.c.b16 %v1267, %v1263
    %v1440 = vpack.c.b16 %v1272, %v1268
    %v1441 = vpack.c.b16 %v1273, %v1269
    %v1442 = vpack.c.b16 %v1274, %v1270
    %v1443 = vpack.c.b16 %v1275, %v1271
    %v1444 = vpack.c.b16 %v1280, %v1276
    %v1445 = vpack.c.b16 %v1281, %v1277
    %v1446 = vpack.c.b16 %v1282, %v1278
    %v1447 = vpack.c.b16 %v1283, %v1279
    %v1448 = vpack.c.b16 %v1288, %v1284
    %v1449 = vpack.c.b16 %v1289, %v1285
    %v1450 = vpack.c.b16 %v1290, %v1286
    %v1451 = vpack.c.b16 %v1291, %v1287
    %v1452 = vpack.c.b16 %v1296, %v1292
    %v1453 = vpack.c.b16 %v1297, %v1293
    %v1454 = vpack.c.b16 %v1298, %v1294
    %v1455 = vpack.c.b16 %v1299, %v1295
    %v1456 = vpack.c.b16 %v1304, %v1300
    %v1457 = vpack.c.b16 %v1305, %v1301
    %v1458 = vpack.c.b16 %v1306, %v1302
    %v1459 = vpack.c.b16 %v1307, %v1303
    %v1460 = vpack.c.b16 %v1312, %v1308
    %v1461 = vpack.c.b16 %v1313, %v1309
    %v1462 = vpack.c.b16 %v1314, %v1310
    %v1463 = vpack.c.b16 %v1315, %v1311
    %v1464 = vpack.c.b16 %v1320, %v1316
    %v1465 = vpack.c.b16 %v1321, %v1317
    %v1466 = vpack.c.b16 %v1322, %v1318
    %v1467 = vpack.c.b16 %v1323, %v1319
    %v1468 = vpack.c.b16 %v1328, %v1324
    %v1469 = vpack.c.b16 %v1329, %v1325
    %v1470 = vpack.c.b16 %v1330, %v1326
    %v1471 = vpack.c.b16 %v1331, %v1327
    %v1472 = vpack.c.b16 %v1336, %v1332
    %v1473 = vpack.c.b16 %v1337, %v1333
    %v1474 = vpack.c.b16 %v1338, %v1334
    %v1475 = vpack.c.b16 %v1339, %v1335
    %v1476 = vpack.c.b16 %v1344, %v1340
    %v1477 = vpack.c.b16 %v1345, %v1341
    %v1478 = vpack.c.b16 %v1346, %v1342
    %v1479 = vpack.c.b16 %v1347, %v1343
    %v1480 = vpack.c.b16 %v1352, %v1348
    %v1481 = vpack.c.b16 %v1353, %v1349
    %v1482 = vpack.c.b16 %v1354, %v1350
    %v1483 = vpack.c.b16 %v1355, %v1351
    %1612 = vmatpush.bf16.msra.mxu0 %v1384
    %1613 = vmatpush.bf16.msra.mxu0 %v1380
    %1614 = vmatpush.bf16.msra.mxu0 %v1376
    %1615 = vmatpush.bf16.msra.mxu0 %v1372
    %1616 = vmatpush.bf16.msra.mxu0 %v1368
    %1617 = vmatpush.bf16.msra.mxu0 %v1364
    %1618 = vmatpush.bf16.msra.mxu0 %v1360
    %1619 = vmatpush.bf16.msra.mxu0 %v1356
    %1620 = vmatmul.bf16.gmra.mxu0 %v959
    %v1621 = vpop.f32.mrf.mxu0
    %v1622 = vadd.f32 %v964, %v1621
    %v1623 = vpop.f32.mrf.mxu0
    %1624 = vdwg.mxu0
    %1625 = vmatpush.bf16.msra.mxu0 %v1416
    %1626 = vmatpush.bf16.msra.mxu0 %v1412
    %1627 = vmatpush.bf16.msra.mxu0 %v1408
    %1628 = vmatpush.bf16.msra.mxu0 %v1404
    %1629 = vmatpush.bf16.msra.mxu0 %v1400
    %1630 = vmatpush.bf16.msra.mxu0 %v1396
    %1631 = vmatpush.bf16.msra.mxu0 %v1392
    %1632 = vmatpush.bf16.msra.mxu0 %v1388
    %1633 = vmatmul.bf16.gmra.mxu0 %v960
    %v1634 = vpop.f32.mrf.mxu0
    %v1635 = vadd.f32 %v1622, %v1634
    %v1636 = vpop.f32.mrf.mxu0
    %1637 = vdwg.mxu0
    %1638 = vmatpush.bf16.msra.mxu0 %v1448
    %1639 = vmatpush.bf16.msra.mxu0 %v1444
    %1640 = vmatpush.bf16.msra.mxu0 %v1440
    %1641 = vmatpush.bf16.msra.mxu0 %v1436
    %1642 = vmatpush.bf16.msra.mxu0 %v1432
    %1643 = vmatpush.bf16.msra.mxu0 %v1428
    %1644 = vmatpush.bf16.msra.mxu0 %v1424
    %1645 = vmatpush.bf16.msra.mxu0 %v1420
    %1646 = vmatmul.bf16.gmra.mxu0 %v961
    %v1647 = vpop.f32.mrf.mxu0
    %v1648 = vadd.f32 %v1635, %v1647
    %v1649 = vpop.f32.mrf.mxu0
    %1650 = vdwg.mxu0
    %1651 = vmatpush.bf16.msra.mxu0 %v1480
    %1652 = vmatpush.bf16.msra.mxu0 %v1476
    %1653 = vmatpush.bf16.msra.mxu0 %v1472
    %1654 = vmatpush.bf16.msra.mxu0 %v1468
    %1655 = vmatpush.bf16.msra.mxu0 %v1464
    %1656 = vmatpush.bf16.msra.mxu0 %v1460
    %1657 = vmatpush.bf16.msra.mxu0 %v1456
    %1658 = vmatpush.bf16.msra.mxu0 %v1452
    %1659 = vmatmul.bf16.gmra.mxu0 %v962
    %v1660 = vpop.f32.mrf.mxu0
    %v1661 = vadd.f32 %v1648, %v1660
    %v1662 = vpop.f32.mrf.mxu0
    %1663 = vdwg.mxu0
    %1664 = vmatpush.bf16.msra.mxu0 %v1385
    %1665 = vmatpush.bf16.msra.mxu0 %v1381
    %1666 = vmatpush.bf16.msra.mxu0 %v1377
    %1667 = vmatpush.bf16.msra.mxu0 %v1373
    %1668 = vmatpush.bf16.msra.mxu0 %v1369
    %1669 = vmatpush.bf16.msra.mxu0 %v1365
    %1670 = vmatpush.bf16.msra.mxu0 %v1361
    %1671 = vmatpush.bf16.msra.mxu0 %v1357
    %1672 = vmatmul.bf16.gmra.mxu0 %v959
    %v1673 = vpop.f32.mrf.mxu0
    %v1674 = vadd.f32 %v965, %v1673
    %v1675 = vpop.f32.mrf.mxu0
    %1676 = vdwg.mxu0
    %1677 = vmatpush.bf16.msra.mxu0 %v1417
    %1678 = vmatpush.bf16.msra.mxu0 %v1413
    %1679 = vmatpush.bf16.msra.mxu0 %v1409
    %1680 = vmatpush.bf16.msra.mxu0 %v1405
    %1681 = vmatpush.bf16.msra.mxu0 %v1401
    %1682 = vmatpush.bf16.msra.mxu0 %v1397
    %1683 = vmatpush.bf16.msra.mxu0 %v1393
    %1684 = vmatpush.bf16.msra.mxu0 %v1389
    %1685 = vmatmul.bf16.gmra.mxu0 %v960
    %v1686 = vpop.f32.mrf.mxu0
    %v1687 = vadd.f32 %v1674, %v1686
    %v1688 = vpop.f32.mrf.mxu0
    %1689 = vdwg.mxu0
    %1690 = vmatpush.bf16.msra.mxu0 %v1449
    %1691 = vmatpush.bf16.msra.mxu0 %v1445
    %1692 = vmatpush.bf16.msra.mxu0 %v1441
    %1693 = vmatpush.bf16.msra.mxu0 %v1437
    %1694 = vmatpush.bf16.msra.mxu0 %v1433
    %1695 = vmatpush.bf16.msra.mxu0 %v1429
    %1696 = vmatpush.bf16.msra.mxu0 %v1425
    %1697 = vmatpush.bf16.msra.mxu0 %v1421
    %1698 = vmatmul.bf16.gmra.mxu0 %v961
    %v1699 = vpop.f32.mrf.mxu0
    %v1700 = vadd.f32 %v1687, %v1699
    %v1701 = vpop.f32.mrf.mxu0
    %1702 = vdwg.mxu0
    %1703 = vmatpush.bf16.msra.mxu0 %v1481
    %1704 = vmatpush.bf16.msra.mxu0 %v1477
    %1705 = vmatpush.bf16.msra.mxu0 %v1473
    %1706 = vmatpush.bf16.msra.mxu0 %v1469
    %1707 = vmatpush.bf16.msra.mxu0 %v1465
    %1708 = vmatpush.bf16.msra.mxu0 %v1461
    %1709 = vmatpush.bf16.msra.mxu0 %v1457
    %1710 = vmatpush.bf16.msra.mxu0 %v1453
    %1711 = vmatmul.bf16.gmra.mxu0 %v962
    %v1712 = vpop.f32.mrf.mxu0
    %v1713 = vadd.f32 %v1700, %v1712
    %v1714 = vpop.f32.mrf.mxu0
    %1715 = vdwg.mxu0
    %1716 = vmatpush.bf16.msra.mxu0 %v1386
    %1717 = vmatpush.bf16.msra.mxu0 %v1382
    %1718 = vmatpush.bf16.msra.mxu0 %v1378
    %1719 = vmatpush.bf16.msra.mxu0 %v1374
    %1720 = vmatpush.bf16.msra.mxu0 %v1370
    %1721 = vmatpush.bf16.msra.mxu0 %v1366
    %1722 = vmatpush.bf16.msra.mxu0 %v1362
    %1723 = vmatpush.bf16.msra.mxu0 %v1358
    %1724 = vmatmul.bf16.gmra.mxu0 %v959
    %v1725 = vpop.f32.mrf.mxu0
    %v1726 = vadd.f32 %v966, %v1725
    %v1727 = vpop.f32.mrf.mxu0
    %1728 = vdwg.mxu0
    %1729 = vmatpush.bf16.msra.mxu0 %v1418
    %1730 = vmatpush.bf16.msra.mxu0 %v1414
    %1731 = vmatpush.bf16.msra.mxu0 %v1410
    %1732 = vmatpush.bf16.msra.mxu0 %v1406
    %1733 = vmatpush.bf16.msra.mxu0 %v1402
    %1734 = vmatpush.bf16.msra.mxu0 %v1398
    %1735 = vmatpush.bf16.msra.mxu0 %v1394
    %1736 = vmatpush.bf16.msra.mxu0 %v1390
    %1737 = vmatmul.bf16.gmra.mxu0 %v960
    %v1738 = vpop.f32.mrf.mxu0
    %v1739 = vadd.f32 %v1726, %v1738
    %v1740 = vpop.f32.mrf.mxu0
    %1741 = vdwg.mxu0
    %1742 = vmatpush.bf16.msra.mxu0 %v1450
    %1743 = vmatpush.bf16.msra.mxu0 %v1446
    %1744 = vmatpush.bf16.msra.mxu0 %v1442
    %1745 = vmatpush.bf16.msra.mxu0 %v1438
    %1746 = vmatpush.bf16.msra.mxu0 %v1434
    %1747 = vmatpush.bf16.msra.mxu0 %v1430
    %1748 = vmatpush.bf16.msra.mxu0 %v1426
    %1749 = vmatpush.bf16.msra.mxu0 %v1422
    %1750 = vmatmul.bf16.gmra.mxu0 %v961
    %v1751 = vpop.f32.mrf.mxu0
    %v1752 = vadd.f32 %v1739, %v1751
    %v1753 = vpop.f32.mrf.mxu0
    %1754 = vdwg.mxu0
    %1755 = vmatpush.bf16.msra.mxu0 %v1482
    %1756 = vmatpush.bf16.msra.mxu0 %v1478
    %1757 = vmatpush.bf16.msra.mxu0 %v1474
    %1758 = vmatpush.bf16.msra.mxu0 %v1470
    %1759 = vmatpush.bf16.msra.mxu0 %v1466
    %1760 = vmatpush.bf16.msra.mxu0 %v1462
    %1761 = vmatpush.bf16.msra.mxu0 %v1458
    %1762 = vmatpush.bf16.msra.mxu0 %v1454
    %1763 = vmatmul.bf16.gmra.mxu0 %v962
    %v1764 = vpop.f32.mrf.mxu0
    %v1765 = vadd.f32 %v1752, %v1764
    %v1766 = vpop.f32.mrf.mxu0
    %1767 = vdwg.mxu0
    %1768 = vmatpush.bf16.msra.mxu0 %v1387
    %1769 = vmatpush.bf16.msra.mxu0 %v1383
    %1770 = vmatpush.bf16.msra.mxu0 %v1379
    %1771 = vmatpush.bf16.msra.mxu0 %v1375
    %1772 = vmatpush.bf16.msra.mxu0 %v1371
    %1773 = vmatpush.bf16.msra.mxu0 %v1367
    %1774 = vmatpush.bf16.msra.mxu0 %v1363
    %1775 = vmatpush.bf16.msra.mxu0 %v1359
    %1776 = vmatmul.bf16.gmra.mxu0 %v959
    %v1777 = vpop.f32.mrf.mxu0
    %v1778 = vadd.f32 %v967, %v1777
    %v1779 = vpop.f32.mrf.mxu0
    %1780 = vdwg.mxu0
    %1781 = vmatpush.bf16.msra.mxu0 %v1419
    %1782 = vmatpush.bf16.msra.mxu0 %v1415
    %1783 = vmatpush.bf16.msra.mxu0 %v1411
    %1784 = vmatpush.bf16.msra.mxu0 %v1407
    %1785 = vmatpush.bf16.msra.mxu0 %v1403
    %1786 = vmatpush.bf16.msra.mxu0 %v1399
    %1787 = vmatpush.bf16.msra.mxu0 %v1395
    %1788 = vmatpush.bf16.msra.mxu0 %v1391
    %1789 = vmatmul.bf16.gmra.mxu0 %v960
    %v1790 = vpop.f32.mrf.mxu0
    %v1791 = vadd.f32 %v1778, %v1790
    %v1792 = vpop.f32.mrf.mxu0
    %1793 = vdwg.mxu0
    %1794 = vmatpush.bf16.msra.mxu0 %v1451
    %1795 = vmatpush.bf16.msra.mxu0 %v1447
    %1796 = vmatpush.bf16.msra.mxu0 %v1443
    %1797 = vmatpush.bf16.msra.mxu0 %v1439
    %1798 = vmatpush.bf16.msra.mxu0 %v1435
    %1799 = vmatpush.bf16.msra.mxu0 %v1431
    %1800 = vmatpush.bf16.msra.mxu0 %v1427
    %1801 = vmatpush.bf16.msra.mxu0 %v1423
    %1802 = vmatmul.bf16.gmra.mxu0 %v961
    %v1803 = vpop.f32.mrf.mxu0
    %v1804 = vadd.f32 %v1791, %v1803
    %v1805 = vpop.f32.mrf.mxu0
    %1806 = vdwg.mxu0
    %1807 = vmatpush.bf16.msra.mxu0 %v1483
    %1808 = vmatpush.bf16.msra.mxu0 %v1479
    %1809 = vmatpush.bf16.msra.mxu0 %v1475
    %1810 = vmatpush.bf16.msra.mxu0 %v1471
    %1811 = vmatpush.bf16.msra.mxu0 %v1467
    %1812 = vmatpush.bf16.msra.mxu0 %v1463
    %1813 = vmatpush.bf16.msra.mxu0 %v1459
    %1814 = vmatpush.bf16.msra.mxu0 %v1455
    %1815 = vmatmul.bf16.gmra.mxu0 %v962
    %v1816 = vpop.f32.mrf.mxu0
    %v1817 = vadd.f32 %v1804, %v1816
    %v1818 = vpop.f32.mrf.mxu0
    %1819 = vdwg.mxu0
    %v1820 = vmax.f32 %v1661, 0.0
    %v1821 = vmax.f32 %v1713, 0.0
    %v1822 = vmax.f32 %v1765, 0.0
    %v1823 = vmax.f32 %v1817, 0.0
    %v1824 = vld [vmem:[#allocation8] sm:$0xff]
    %v1825 = vld [vmem:[#allocation8 + $0x8] sm:$0xff]
    %v1826 = vld [vmem:[#allocation8 + $0x10] sm:$0xff]
    %v1827 = vld [vmem:[#allocation8 + $0x18] sm:$0xff]
    %v1828 = vld [vmem:[#allocation8 + $0x20] sm:$0xff]
    %v1829 = vld [vmem:[#allocation8 + $0x28] sm:$0xff]
    %v1830 = vld [vmem:[#allocation8 + $0x30] sm:$0xff]
    %v1831 = vld [vmem:[#allocation8 + $0x38] sm:$0xff]
    %v1832 = vld [vmem:[#allocation8 + $0x40] sm:$0xff]
    %v1833 = vld [vmem:[#allocation8 + $0x48] sm:$0xff]
    %v1834 = vld [vmem:[#allocation8 + $0x50] sm:$0xff]
    %v1835 = vld [vmem:[#allocation8 + $0x58] sm:$0xff]
    %v1836 = vld [vmem:[#allocation8 + $0x60] sm:$0xff]
    %v1837 = vld [vmem:[#allocation8 + $0x68] sm:$0xff]
    %v1838 = vld [vmem:[#allocation8 + $0x70] sm:$0xff]
    %v1839 = vld [vmem:[#allocation8 + $0x78] sm:$0xff]
    %v1840 = vld [vmem:[#allocation8 + $0x80] sm:$0xff]
    %v1841 = vld [vmem:[#allocation8 + $0x88] sm:$0xff]
    %v1842 = vld [vmem:[#allocation8 + $0x90] sm:$0xff]
    %v1843 = vld [vmem:[#allocation8 + $0x98] sm:$0xff]
    %v1844 = vld [vmem:[#allocation8 + $0xa0] sm:$0xff]
    %v1845 = vld [vmem:[#allocation8 + $0xa8] sm:$0xff]
    %v1846 = vld [vmem:[#allocation8 + $0xb0] sm:$0xff]
    %v1847 = vld [vmem:[#allocation8 + $0xb8] sm:$0xff]
    %v1848 = vld [vmem:[#allocation8 + $0xc0] sm:$0xff]
    %v1849 = vld [vmem:[#allocation8 + $0xc8] sm:$0xff]
    %v1850 = vld [vmem:[#allocation8 + $0xd0] sm:$0xff]
    %v1851 = vld [vmem:[#allocation8 + $0xd8] sm:$0xff]
    %v1852 = vld [vmem:[#allocation8 + $0xe0] sm:$0xff]
    %v1853 = vld [vmem:[#allocation8 + $0xe8] sm:$0xff]
    %v1854 = vld [vmem:[#allocation8 + $0xf0] sm:$0xff]
    %v1855 = vld [vmem:[#allocation8 + $0xf8] sm:$0xff]
    %v1856 = vld [vmem:[#allocation8 + $0x100] sm:$0xff]
    %v1857 = vld [vmem:[#allocation8 + $0x108] sm:$0xff]
    %v1858 = vld [vmem:[#allocation8 + $0x110] sm:$0xff]
    %v1859 = vld [vmem:[#allocation8 + $0x118] sm:$0xff]
    %v1860 = vld [vmem:[#allocation8 + $0x120] sm:$0xff]
    %v1861 = vld [vmem:[#allocation8 + $0x128] sm:$0xff]
    %v1862 = vld [vmem:[#allocation8 + $0x130] sm:$0xff]
    %v1863 = vld [vmem:[#allocation8 + $0x138] sm:$0xff]
    %v1864 = vld [vmem:[#allocation8 + $0x140] sm:$0xff]
    %v1865 = vld [vmem:[#allocation8 + $0x148] sm:$0xff]
    %v1866 = vld [vmem:[#allocation8 + $0x150] sm:$0xff]
    %v1867 = vld [vmem:[#allocation8 + $0x158] sm:$0xff]
    %v1868 = vld [vmem:[#allocation8 + $0x160] sm:$0xff]
    %v1869 = vld [vmem:[#allocation8 + $0x168] sm:$0xff]
    %v1870 = vld [vmem:[#allocation8 + $0x170] sm:$0xff]
    %v1871 = vld [vmem:[#allocation8 + $0x178] sm:$0xff]
    %v1872 = vld [vmem:[#allocation8 + $0x180] sm:$0xff]
    %v1873 = vld [vmem:[#allocation8 + $0x188] sm:$0xff]
    %v1874 = vld [vmem:[#allocation8 + $0x190] sm:$0xff]
    %v1875 = vld [vmem:[#allocation8 + $0x198] sm:$0xff]
    %v1876 = vld [vmem:[#allocation8 + $0x1a0] sm:$0xff]
    %v1877 = vld [vmem:[#allocation8 + $0x1a8] sm:$0xff]
    %v1878 = vld [vmem:[#allocation8 + $0x1b0] sm:$0xff]
    %v1879 = vld [vmem:[#allocation8 + $0x1b8] sm:$0xff]
    %v1880 = vld [vmem:[#allocation8 + $0x1c0] sm:$0xff]
    %v1881 = vld [vmem:[#allocation8 + $0x1c8] sm:$0xff]
    %v1882 = vld [vmem:[#allocation8 + $0x1d0] sm:$0xff]
    %v1883 = vld [vmem:[#allocation8 + $0x1d8] sm:$0xff]
    %v1884 = vld [vmem:[#allocation8 + $0x1e0] sm:$0xff]
    %v1885 = vld [vmem:[#allocation8 + $0x1e8] sm:$0xff]
    %v1886 = vld [vmem:[#allocation8 + $0x1f0] sm:$0xff]
    %v1887 = vld [vmem:[#allocation8 + $0x1f8] sm:$0xff]
    %v1888 = vld [vmem:[#allocation16 + $0x8] sm:$0x3]
    %v1889 = vpack.c.bf16 %v1820, %v1820
    %v1890 = vpack.c.bf16 %v1821, %v1821
    %v1891 = vpack.c.bf16 %v1822, %v1822
    %v1892 = vpack.c.bf16 %v1823, %v1823
    %v1894 = vperm.slane %v1888, 0
    %v1895 = vperm.slane %v1888, 1
    %v1962 = vunpack.c.l.b16 %v1824
    %v1963 = vunpack.c.h.b16 %v1824
    %v1964 = vunpack.c.l.b16 %v1825
    %v1965 = vunpack.c.h.b16 %v1825
    %v1966 = vunpack.c.l.b16 %v1826
    %v1967 = vunpack.c.h.b16 %v1826
    %v1968 = vunpack.c.l.b16 %v1827
    %v1969 = vunpack.c.h.b16 %v1827
    %v1970 = vunpack.c.l.b16 %v1828
    %v1971 = vunpack.c.h.b16 %v1828
    %v1972 = vunpack.c.l.b16 %v1829
    %v1973 = vunpack.c.h.b16 %v1829
    %v1974 = vunpack.c.l.b16 %v1830
    %v1975 = vunpack.c.h.b16 %v1830
    %v1976 = vunpack.c.l.b16 %v1831
    %v1977 = vunpack.c.h.b16 %v1831
    %v1978 = vunpack.c.l.b16 %v1832
    %v1979 = vunpack.c.h.b16 %v1832
    %v1980 = vunpack.c.l.b16 %v1833
    %v1981 = vunpack.c.h.b16 %v1833
    %v1982 = vunpack.c.l.b16 %v1834
    %v1983 = vunpack.c.h.b16 %v1834
    %v1984 = vunpack.c.l.b16 %v1835
    %v1985 = vunpack.c.h.b16 %v1835
    %v1986 = vunpack.c.l.b16 %v1836
    %v1987 = vunpack.c.h.b16 %v1836
    %v1988 = vunpack.c.l.b16 %v1837
    %v1989 = vunpack.c.h.b16 %v1837
    %v1990 = vunpack.c.l.b16 %v1838
    %v1991 = vunpack.c.h.b16 %v1838
    %v1992 = vunpack.c.l.b16 %v1839
    %v1993 = vunpack.c.h.b16 %v1839
    %v1994 = vunpack.c.l.b16 %v1840
    %v1995 = vunpack.c.h.b16 %v1840
    %v1996 = vunpack.c.l.b16 %v1841
    %v1997 = vunpack.c.h.b16 %v1841
    %v1998 = vunpack.c.l.b16 %v1842
    %v1999 = vunpack.c.h.b16 %v1842
    %v2000 = vunpack.c.l.b16 %v1843
    %v2001 = vunpack.c.h.b16 %v1843
    %v2002 = vunpack.c.l.b16 %v1844
    %v2003 = vunpack.c.h.b16 %v1844
    %v2004 = vunpack.c.l.b16 %v1845
    %v2005 = vunpack.c.h.b16 %v1845
    %v2006 = vunpack.c.l.b16 %v1846
    %v2007 = vunpack.c.h.b16 %v1846
    %v2008 = vunpack.c.l.b16 %v1847
    %v2009 = vunpack.c.h.b16 %v1847
    %v2010 = vunpack.c.l.b16 %v1848
    %v2011 = vunpack.c.h.b16 %v1848
    %v2012 = vunpack.c.l.b16 %v1849
    %v2013 = vunpack.c.h.b16 %v1849
    %v2014 = vunpack.c.l.b16 %v1850
    %v2015 = vunpack.c.h.b16 %v1850
    %v2016 = vunpack.c.l.b16 %v1851
    %v2017 = vunpack.c.h.b16 %v1851
    %v2018 = vunpack.c.l.b16 %v1852
    %v2019 = vunpack.c.h.b16 %v1852
    %v2020 = vunpack.c.l.b16 %v1853
    %v2021 = vunpack.c.h.b16 %v1853
    %v2022 = vunpack.c.l.b16 %v1854
    %v2023 = vunpack.c.h.b16 %v1854
    %v2024 = vunpack.c.l.b16 %v1855
    %v2025 = vunpack.c.h.b16 %v1855
    %v2026 = vunpack.c.l.b16 %v1856
    %v2027 = vunpack.c.h.b16 %v1856
    %v2028 = vunpack.c.l.b16 %v1857
    %v2029 = vunpack.c.h.b16 %v1857
    %v2030 = vunpack.c.l.b16 %v1858
    %v2031 = vunpack.c.h.b16 %v1858
    %v2032 = vunpack.c.l.b16 %v1859
    %v2033 = vunpack.c.h.b16 %v1859
    %v2034 = vunpack.c.l.b16 %v1860
    %v2035 = vunpack.c.h.b16 %v1860
    %v2036 = vunpack.c.l.b16 %v1861
    %v2037 = vunpack.c.h.b16 %v1861
    %v2038 = vunpack.c.l.b16 %v1862
    %v2039 = vunpack.c.h.b16 %v1862
    %v2040 = vunpack.c.l.b16 %v1863
    %v2041 = vunpack.c.h.b16 %v1863
    %v2042 = vunpack.c.l.b16 %v1864
    %v2043 = vunpack.c.h.b16 %v1864
    %v2044 = vunpack.c.l.b16 %v1865
    %v2045 = vunpack.c.h.b16 %v1865
    %v2046 = vunpack.c.l.b16 %v1866
    %v2047 = vunpack.c.h.b16 %v1866
    %v2048 = vunpack.c.l.b16 %v1867
    %v2049 = vunpack.c.h.b16 %v1867
    %v2050 = vunpack.c.l.b16 %v1868
    %v2051 = vunpack.c.h.b16 %v1868
    %v2052 = vunpack.c.l.b16 %v1869
    %v2053 = vunpack.c.h.b16 %v1869
    %v2054 = vunpack.c.l.b16 %v1870
    %v2055 = vunpack.c.h.b16 %v1870
    %v2056 = vunpack.c.l.b16 %v1871
    %v2057 = vunpack.c.h.b16 %v1871
    %v2058 = vunpack.c.l.b16 %v1872
    %v2059 = vunpack.c.h.b16 %v1872
    %v2060 = vunpack.c.l.b16 %v1873
    %v2061 = vunpack.c.h.b16 %v1873
    %v2062 = vunpack.c.l.b16 %v1874
    %v2063 = vunpack.c.h.b16 %v1874
    %v2064 = vunpack.c.l.b16 %v1875
    %v2065 = vunpack.c.h.b16 %v1875
    %v2066 = vunpack.c.l.b16 %v1876
    %v2067 = vunpack.c.h.b16 %v1876
    %v2068 = vunpack.c.l.b16 %v1877
    %v2069 = vunpack.c.h.b16 %v1877
    %v2070 = vunpack.c.l.b16 %v1878
    %v2071 = vunpack.c.h.b16 %v1878
    %v2072 = vunpack.c.l.b16 %v1879
    %v2073 = vunpack.c.h.b16 %v1879
    %v2074 = vunpack.c.l.b16 %v1880
    %v2075 = vunpack.c.h.b16 %v1880
    %v2076 = vunpack.c.l.b16 %v1881
    %v2077 = vunpack.c.h.b16 %v1881
    %v2078 = vunpack.c.l.b16 %v1882
    %v2079 = vunpack.c.h.b16 %v1882
    %v2080 = vunpack.c.l.b16 %v1883
    %v2081 = vunpack.c.h.b16 %v1883
    %v2082 = vunpack.c.l.b16 %v1884
    %v2083 = vunpack.c.h.b16 %v1884
    %v2084 = vunpack.c.l.b16 %v1885
    %v2085 = vunpack.c.h.b16 %v1885
    %v2086 = vunpack.c.l.b16 %v1886
    %v2087 = vunpack.c.h.b16 %v1886
    %v2088 = vunpack.c.l.b16 %v1887
    %v2089 = vunpack.c.h.b16 %v1887
    %v2090 = vpack.c.b16 %v1964, %v1962
    %v2091 = vpack.c.b16 %v1965, %v1963
    %v2092 = vpack.c.b16 %v1968, %v1966
    %v2093 = vpack.c.b16 %v1969, %v1967
    %v2094 = vpack.c.b16 %v1972, %v1970
    %v2095 = vpack.c.b16 %v1973, %v1971
    %v2096 = vpack.c.b16 %v1976, %v1974
    %v2097 = vpack.c.b16 %v1977, %v1975
    %v2098 = vpack.c.b16 %v1980, %v1978
    %v2099 = vpack.c.b16 %v1981, %v1979
    %v2100 = vpack.c.b16 %v1984, %v1982
    %v2101 = vpack.c.b16 %v1985, %v1983
    %v2102 = vpack.c.b16 %v1988, %v1986
    %v2103 = vpack.c.b16 %v1989, %v1987
    %v2104 = vpack.c.b16 %v1992, %v1990
    %v2105 = vpack.c.b16 %v1993, %v1991
    %v2106 = vpack.c.b16 %v1996, %v1994
    %v2107 = vpack.c.b16 %v1997, %v1995
    %v2108 = vpack.c.b16 %v2000, %v1998
    %v2109 = vpack.c.b16 %v2001, %v1999
    %v2110 = vpack.c.b16 %v2004, %v2002
    %v2111 = vpack.c.b16 %v2005, %v2003
    %v2112 = vpack.c.b16 %v2008, %v2006
    %v2113 = vpack.c.b16 %v2009, %v2007
    %v2114 = vpack.c.b16 %v2012, %v2010
    %v2115 = vpack.c.b16 %v2013, %v2011
    %v2116 = vpack.c.b16 %v2016, %v2014
    %v2117 = vpack.c.b16 %v2017, %v2015
    %v2118 = vpack.c.b16 %v2020, %v2018
    %v2119 = vpack.c.b16 %v2021, %v2019
    %v2120 = vpack.c.b16 %v2024, %v2022
    %v2121 = vpack.c.b16 %v2025, %v2023
    %v2122 = vpack.c.b16 %v2028, %v2026
    %v2123 = vpack.c.b16 %v2029, %v2027
    %v2124 = vpack.c.b16 %v2032, %v2030
    %v2125 = vpack.c.b16 %v2033, %v2031
    %v2126 = vpack.c.b16 %v2036, %v2034
    %v2127 = vpack.c.b16 %v2037, %v2035
    %v2128 = vpack.c.b16 %v2040, %v2038
    %v2129 = vpack.c.b16 %v2041, %v2039
    %v2130 = vpack.c.b16 %v2044, %v2042
    %v2131 = vpack.c.b16 %v2045, %v2043
    %v2132 = vpack.c.b16 %v2048, %v2046
    %v2133 = vpack.c.b16 %v2049, %v2047
    %v2134 = vpack.c.b16 %v2052, %v2050
    %v2135 = vpack.c.b16 %v2053, %v2051
    %v2136 = vpack.c.b16 %v2056, %v2054
    %v2137 = vpack.c.b16 %v2057, %v2055
    %v2138 = vpack.c.b16 %v2060, %v2058
    %v2139 = vpack.c.b16 %v2061, %v2059
    %v2140 = vpack.c.b16 %v2064, %v2062
    %v2141 = vpack.c.b16 %v2065, %v2063
    %v2142 = vpack.c.b16 %v2068, %v2066
    %v2143 = vpack.c.b16 %v2069, %v2067
    %v2144 = vpack.c.b16 %v2072, %v2070
    %v2145 = vpack.c.b16 %v2073, %v2071
    %v2146 = vpack.c.b16 %v2076, %v2074
    %v2147 = vpack.c.b16 %v2077, %v2075
    %v2148 = vpack.c.b16 %v2080, %v2078
    %v2149 = vpack.c.b16 %v2081, %v2079
    %v2150 = vpack.c.b16 %v2084, %v2082
    %v2151 = vpack.c.b16 %v2085, %v2083
    %v2152 = vpack.c.b16 %v2088, %v2086
    %v2153 = vpack.c.b16 %v2089, %v2087
    %2218 = vmatpush.bf16.msra.mxu0 %v2104
    %2219 = vmatpush.bf16.msra.mxu0 %v2102
    %2220 = vmatpush.bf16.msra.mxu0 %v2100
    %2221 = vmatpush.bf16.msra.mxu0 %v2098
    %2222 = vmatpush.bf16.msra.mxu0 %v2096
    %2223 = vmatpush.bf16.msra.mxu0 %v2094
    %2224 = vmatpush.bf16.msra.mxu0 %v2092
    %2225 = vmatpush.bf16.msra.mxu0 %v2090
    %2226 = vmatmul.bf16.gmra.mxu0 %v1889
    %v2227 = vpop.f32.mrf.mxu0
    %v2228 = vadd.f32 %v1894, %v2227
    %v2229 = vpop.f32.mrf.mxu0
    %2230 = vdwg.mxu0
    %2231 = vmatpush.bf16.msra.mxu0 %v2120
    %2232 = vmatpush.bf16.msra.mxu0 %v2118
    %2233 = vmatpush.bf16.msra.mxu0 %v2116
    %2234 = vmatpush.bf16.msra.mxu0 %v2114
    %2235 = vmatpush.bf16.msra.mxu0 %v2112
    %2236 = vmatpush.bf16.msra.mxu0 %v2110
    %2237 = vmatpush.bf16.msra.mxu0 %v2108
    %2238 = vmatpush.bf16.msra.mxu0 %v2106
    %2239 = vmatmul.bf16.gmra.mxu0 %v1890
    %v2240 = vpop.f32.mrf.mxu0
    %v2241 = vadd.f32 %v2228, %v2240
    %v2242 = vpop.f32.mrf.mxu0
    %2243 = vdwg.mxu0
    %2244 = vmatpush.bf16.msra.mxu0 %v2136
    %2245 = vmatpush.bf16.msra.mxu0 %v2134
    %2246 = vmatpush.bf16.msra.mxu0 %v2132
    %2247 = vmatpush.bf16.msra.mxu0 %v2130
    %2248 = vmatpush.bf16.msra.mxu0 %v2128
    %2249 = vmatpush.bf16.msra.mxu0 %v2126
    %2250 = vmatpush.bf16.msra.mxu0 %v2124
    %2251 = vmatpush.bf16.msra.mxu0 %v2122
    %2252 = vmatmul.bf16.gmra.mxu0 %v1891
    %v2253 = vpop.f32.mrf.mxu0
    %v2254 = vadd.f32 %v2241, %v2253
    %v2255 = vpop.f32.mrf.mxu0
    %2256 = vdwg.mxu0
    %2257 = vmatpush.bf16.msra.mxu0 %v2152
    %2258 = vmatpush.bf16.msra.mxu0 %v2150
    %2259 = vmatpush.bf16.msra.mxu0 %v2148
    %2260 = vmatpush.bf16.msra.mxu0 %v2146
    %2261 = vmatpush.bf16.msra.mxu0 %v2144
    %2262 = vmatpush.bf16.msra.mxu0 %v2142
    %2263 = vmatpush.bf16.msra.mxu0 %v2140
    %2264 = vmatpush.bf16.msra.mxu0 %v2138
    %2265 = vmatmul.bf16.gmra.mxu0 %v1892
    %v2266 = vpop.f32.mrf.mxu0
    %v2267 = vadd.f32 %v2254, %v2266
    %v2268 = vpop.f32.mrf.mxu0
    %2269 = vdwg.mxu0
    %2270 = vmatpush.bf16.msra.mxu0 %v2105
    %2271 = vmatpush.bf16.msra.mxu0 %v2103
    %2272 = vmatpush.bf16.msra.mxu0 %v2101
    %2273 = vmatpush.bf16.msra.mxu0 %v2099
    %2274 = vmatpush.bf16.msra.mxu0 %v2097
    %2275 = vmatpush.bf16.msra.mxu0 %v2095
    %2276 = vmatpush.bf16.msra.mxu0 %v2093
    %2277 = vmatpush.bf16.msra.mxu0 %v2091
    %2278 = vmatmul.bf16.gmra.mxu0 %v1889
    %v2279 = vpop.f32.mrf.mxu0
    %v2280 = vadd.f32 %v1895, %v2279
    %v2281 = vpop.f32.mrf.mxu0
    %2282 = vdwg.mxu0
    %2283 = vmatpush.bf16.msra.mxu0 %v2121
    %2284 = vmatpush.bf16.msra.mxu0 %v2119
    %2285 = vmatpush.bf16.msra.mxu0 %v2117
    %2286 = vmatpush.bf16.msra.mxu0 %v2115
    %2287 = vmatpush.bf16.msra.mxu0 %v2113
    %2288 = vmatpush.bf16.msra.mxu0 %v2111
    %2289 = vmatpush.bf16.msra.mxu0 %v2109
    %2290 = vmatpush.bf16.msra.mxu0 %v2107
    %2291 = vmatmul.bf16.gmra.mxu0 %v1890
    %v2292 = vpop.f32.mrf.mxu0
    %v2293 = vadd.f32 %v2280, %v2292
    %v2294 = vpop.f32.mrf.mxu0
    %2295 = vdwg.mxu0
    %2296 = vmatpush.bf16.msra.mxu0 %v2137
    %2297 = vmatpush.bf16.msra.mxu0 %v2135
    %2298 = vmatpush.bf16.msra.mxu0 %v2133
    %2299 = vmatpush.bf16.msra.mxu0 %v2131
    %2300 = vmatpush.bf16.msra.mxu0 %v2129
    %2301 = vmatpush.bf16.msra.mxu0 %v2127
    %2302 = vmatpush.bf16.msra.mxu0 %v2125
    %2303 = vmatpush.bf16.msra.mxu0 %v2123
    %2304 = vmatmul.bf16.gmra.mxu0 %v1891
    %v2305 = vpop.f32.mrf.mxu0
    %v2306 = vadd.f32 %v2293, %v2305
    %v2307 = vpop.f32.mrf.mxu0
    %2308 = vdwg.mxu0
    %2309 = vmatpush.bf16.msra.mxu0 %v2153
    %2310 = vmatpush.bf16.msra.mxu0 %v2151
    %2311 = vmatpush.bf16.msra.mxu0 %v2149
    %2312 = vmatpush.bf16.msra.mxu0 %v2147
    %2313 = vmatpush.bf16.msra.mxu0 %v2145
    %2314 = vmatpush.bf16.msra.mxu0 %v2143
    %2315 = vmatpush.bf16.msra.mxu0 %v2141
    %2316 = vmatpush.bf16.msra.mxu0 %v2139
    %2317 = vmatmul.bf16.gmra.mxu0 %v1892
    %v2318 = vpop.f32.mrf.mxu0
    %v2319 = vadd.f32 %v2306, %v2318
    %v2320 = vpop.f32.mrf.mxu0
    %2321 = vdwg.mxu0
    %v2322 = vmax.f32 %v2267, 0.0
    %v2323 = vmax.f32 %v2319, 0.0
    %v2324 = vld [vmem:[#allocation10] sm:$0xf]
    %v2325 = vld [vmem:[#allocation10 + $0x4] sm:$0xf]
    %v2326 = vld [vmem:[#allocation10 + $0x8] sm:$0xf]
    %v2327 = vld [vmem:[#allocation10 + $0xc] sm:$0xf]
    %v2328 = vld [vmem:[#allocation10 + $0x10] sm:$0xf]
    %v2329 = vld [vmem:[#allocation10 + $0x14] sm:$0xf]
    %v2330 = vld [vmem:[#allocation10 + $0x18] sm:$0xf]
    %v2331 = vld [vmem:[#allocation10 + $0x1c] sm:$0xf]
    %v2332 = vld [vmem:[#allocation10 + $0x20] sm:$0xf]
    %v2333 = vld [vmem:[#allocation10 + $0x24] sm:$0xf]
    %v2334 = vld [vmem:[#allocation10 + $0x28] sm:$0xf]
    %v2335 = vld [vmem:[#allocation10 + $0x2c] sm:$0xf]
    %v2336 = vld [vmem:[#allocation10 + $0x30] sm:$0xf]
    %v2337 = vld [vmem:[#allocation10 + $0x34] sm:$0xf]
    %v2338 = vld [vmem:[#allocation10 + $0x38] sm:$0xf]
    %v2339 = vld [vmem:[#allocation10 + $0x3c] sm:$0xf]
    %v2340 = vld [vmem:[#allocation10 + $0x40] sm:$0xf]
    %v2341 = vld [vmem:[#allocation10 + $0x44] sm:$0xf]
    %v2342 = vld [vmem:[#allocation10 + $0x48] sm:$0xf]
    %v2343 = vld [vmem:[#allocation10 + $0x4c] sm:$0xf]
    %v2344 = vld [vmem:[#allocation10 + $0x50] sm:$0xf]
    %v2345 = vld [vmem:[#allocation10 + $0x54] sm:$0xf]
    %v2346 = vld [vmem:[#allocation10 + $0x58] sm:$0xf]
    %v2347 = vld [vmem:[#allocation10 + $0x5c] sm:$0xf]
    %v2348 = vld [vmem:[#allocation10 + $0x60] sm:$0xf]
    %v2349 = vld [vmem:[#allocation10 + $0x64] sm:$0xf]
    %v2350 = vld [vmem:[#allocation10 + $0x68] sm:$0xf]
    %v2351 = vld [vmem:[#allocation10 + $0x6c] sm:$0xf]
    %v2352 = vld [vmem:[#allocation10 + $0x70] sm:$0xf]
    %v2353 = vld [vmem:[#allocation10 + $0x74] sm:$0xf]
    %v2354 = vld [vmem:[#allocation10 + $0x78] sm:$0xf]
    %v2355 = vld [vmem:[#allocation10 + $0x7c] sm:$0xf]
    %v2356 = vld [vmem:[#allocation16 + $0xa] sm:$0x1]
    %v2357 = vpack.c.bf16 %v2322, %v2322
    %v2358 = vpack.c.bf16 %v2323, %v2323
    %v2360 = vperm.slane %v2356, 0
    %v2394 = vunpack.c.l.b16 %v2324
    %v2395 = vunpack.c.l.b16 %v2325
    %v2396 = vunpack.c.l.b16 %v2326
    %v2397 = vunpack.c.l.b16 %v2327
    %v2398 = vunpack.c.l.b16 %v2328
    %v2399 = vunpack.c.l.b16 %v2329
    %v2400 = vunpack.c.l.b16 %v2330
    %v2401 = vunpack.c.l.b16 %v2331
    %v2402 = vunpack.c.l.b16 %v2332
    %v2403 = vunpack.c.l.b16 %v2333
    %v2404 = vunpack.c.l.b16 %v2334
    %v2405 = vunpack.c.l.b16 %v2335
    %v2406 = vunpack.c.l.b16 %v2336
    %v2407 = vunpack.c.l.b16 %v2337
    %v2408 = vunpack.c.l.b16 %v2338
    %v2409 = vunpack.c.l.b16 %v2339
    %v2410 = vunpack.c.l.b16 %v2340
    %v2411 = vunpack.c.l.b16 %v2341
    %v2412 = vunpack.c.l.b16 %v2342
    %v2413 = vunpack.c.l.b16 %v2343
    %v2414 = vunpack.c.l.b16 %v2344
    %v2415 = vunpack.c.l.b16 %v2345
    %v2416 = vunpack.c.l.b16 %v2346
    %v2417 = vunpack.c.l.b16 %v2347
    %v2418 = vunpack.c.l.b16 %v2348
    %v2419 = vunpack.c.l.b16 %v2349
    %v2420 = vunpack.c.l.b16 %v2350
    %v2421 = vunpack.c.l.b16 %v2351
    %v2422 = vunpack.c.l.b16 %v2352
    %v2423 = vunpack.c.l.b16 %v2353
    %v2424 = vunpack.c.l.b16 %v2354
    %v2425 = vunpack.c.l.b16 %v2355
    %v2426 = vpack.c.b16 %v2395, %v2394
    %v2427 = vpack.c.b16 %v2397, %v2396
    %v2428 = vpack.c.b16 %v2399, %v2398
    %v2429 = vpack.c.b16 %v2401, %v2400
    %v2430 = vpack.c.b16 %v2403, %v2402
    %v2431 = vpack.c.b16 %v2405, %v2404
    %v2432 = vpack.c.b16 %v2407, %v2406
    %v2433 = vpack.c.b16 %v2409, %v2408
    %v2434 = vpack.c.b16 %v2411, %v2410
    %v2435 = vpack.c.b16 %v2413, %v2412
    %v2436 = vpack.c.b16 %v2415, %v2414
    %v2437 = vpack.c.b16 %v2417, %v2416
    %v2438 = vpack.c.b16 %v2419, %v2418
    %v2439 = vpack.c.b16 %v2421, %v2420
    %v2440 = vpack.c.b16 %v2423, %v2422
    %v2441 = vpack.c.b16 %v2425, %v2424
    %2458 = vmatpush.bf16.msra.mxu0 %v2433
    %2459 = vmatpush.bf16.msra.mxu0 %v2432
    %2460 = vmatpush.bf16.msra.mxu0 %v2431
    %2461 = vmatpush.bf16.msra.mxu0 %v2430
    %2462 = vmatpush.bf16.msra.mxu0 %v2429
    %2463 = vmatpush.bf16.msra.mxu0 %v2428
    %2464 = vmatpush.bf16.msra.mxu0 %v2427
    %2465 = vmatpush.bf16.msra.mxu0 %v2426
    %2466 = vmatmul.bf16.gmra.mxu0 %v2357
    %v2467 = vpop.f32.mrf.mxu0
    %v2468 = vadd.f32 %v2360, %v2467
    %v2469 = vpop.f32.mrf.mxu0
    %2470 = vdwg.mxu0
    %2471 = vmatpush.bf16.msra.mxu0 %v2441
    %2472 = vmatpush.bf16.msra.mxu0 %v2440
    %2473 = vmatpush.bf16.msra.mxu0 %v2439
    %2474 = vmatpush.bf16.msra.mxu0 %v2438
    %2475 = vmatpush.bf16.msra.mxu0 %v2437
    %2476 = vmatpush.bf16.msra.mxu0 %v2436
    %2477 = vmatpush.bf16.msra.mxu0 %v2435
    %2478 = vmatpush.bf16.msra.mxu0 %v2434
    %2479 = vmatmul.bf16.gmra.mxu0 %v2358
    %v2480 = vpop.f32.mrf.mxu0
    %v2481 = vadd.f32 %v2468, %v2480
    %v2482 = vpop.f32.mrf.mxu0
    %2483 = vdwg.mxu0
    %v2484 = vmax.f32 %v2481, 0.0
    %v2485 = vld [vmem:[#allocation11] sm:$0xf]
    %v2486 = vld [vmem:[#allocation11 + $0x4] sm:$0xf]
    %v2487 = vld [vmem:[#allocation11 + $0x8] sm:$0xf]
    %v2488 = vld [vmem:[#allocation11 + $0xc] sm:$0xf]
    %v2489 = vld [vmem:[#allocation11 + $0x10] sm:$0xf]
    %v2490 = vld [vmem:[#allocation11 + $0x14] sm:$0xf]
    %v2491 = vld [vmem:[#allocation11 + $0x18] sm:$0xf]
    %v2492 = vld [vmem:[#allocation11 + $0x1c] sm:$0xf]
    %v2493 = vld [vmem:[#allocation11 + $0x20] sm:$0xf]
    %v2494 = vld [vmem:[#allocation11 + $0x24] sm:$0xf]
    %v2495 = vld [vmem:[#allocation11 + $0x28] sm:$0xf]
    %v2496 = vld [vmem:[#allocation11 + $0x2c] sm:$0xf]
    %v2497 = vld [vmem:[#allocation11 + $0x30] sm:$0xf]
    %v2498 = vld [vmem:[#allocation11 + $0x34] sm:$0xf]
    %v2499 = vld [vmem:[#allocation11 + $0x38] sm:$0xf]
    %v2500 = vld [vmem:[#allocation11 + $0x3c] sm:$0xf]
    %v2501 = vld [vmem:[#allocation16 + $0xb] sm:$0x1]
    %v2502 = vpack.c.bf16 %v2484, %v2484
    %v2504 = vperm.slane %v2501, 0
    %v2522 = vunpack.c.l.b16 %v2485
    %v2523 = vunpack.c.l.b16 %v2486
    %v2524 = vunpack.c.l.b16 %v2487
    %v2525 = vunpack.c.l.b16 %v2488
    %v2526 = vunpack.c.l.b16 %v2489
    %v2527 = vunpack.c.l.b16 %v2490
    %v2528 = vunpack.c.l.b16 %v2491
    %v2529 = vunpack.c.l.b16 %v2492
    %v2530 = vunpack.c.l.b16 %v2493
    %v2531 = vunpack.c.l.b16 %v2494
    %v2532 = vunpack.c.l.b16 %v2495
    %v2533 = vunpack.c.l.b16 %v2496
    %v2534 = vunpack.c.l.b16 %v2497
    %v2535 = vunpack.c.l.b16 %v2498
    %v2536 = vunpack.c.l.b16 %v2499
    %v2537 = vunpack.c.l.b16 %v2500
    %v2538 = vpack.c.b16 %v2523, %v2522
    %v2539 = vpack.c.b16 %v2525, %v2524
    %v2540 = vpack.c.b16 %v2527, %v2526
    %v2541 = vpack.c.b16 %v2529, %v2528
    %v2542 = vpack.c.b16 %v2531, %v2530
    %v2543 = vpack.c.b16 %v2533, %v2532
    %v2544 = vpack.c.b16 %v2535, %v2534
    %v2545 = vpack.c.b16 %v2537, %v2536
    %2554 = vmatpush.bf16.msra.mxu0 %v2545
    %2555 = vmatpush.bf16.msra.mxu0 %v2544
    %2556 = vmatpush.bf16.msra.mxu0 %v2543
    %2557 = vmatpush.bf16.msra.mxu0 %v2542
    %2558 = vmatpush.bf16.msra.mxu0 %v2541
    %2559 = vmatpush.bf16.msra.mxu0 %v2540
    %2560 = vmatpush.bf16.msra.mxu0 %v2539
    %2561 = vmatpush.bf16.msra.mxu0 %v2538
    %2562 = vmatmul.bf16.gmra.mxu0 %v2502
    %v2563 = vpop.f32.mrf.mxu0
    %v2564 = vadd.f32 %v2504, %v2563
    %v2565 = vpop.f32.mrf.mxu0
    %2566 = vdwg.mxu0
    %v2567 = vmax.f32 %v2564, 0.0
    %v2568 = vld [vmem:[#allocation13] sm:$0xf]
    %v2569 = vld [vmem:[#allocation13 + $0x4] sm:$0xf]
    %v2570 = vld [vmem:[#allocation13 + $0x8] sm:$0xf]
    %v2571 = vld [vmem:[#allocation13 + $0xc] sm:$0xf]
    %v2572 = vld [vmem:[#allocation13 + $0x10] sm:$0xf]
    %v2573 = vld [vmem:[#allocation13 + $0x14] sm:$0xf]
    %v2574 = vld [vmem:[#allocation13 + $0x18] sm:$0xf]
    %v2575 = vld [vmem:[#allocation13 + $0x1c] sm:$0xf]
    %v2576 = vld [vmem:[#allocation13 + $0x20] sm:$0xf]
    %v2577 = vld [vmem:[#allocation13 + $0x24] sm:$0xf]
    %v2578 = vld [vmem:[#allocation13 + $0x28] sm:$0xf]
    %v2579 = vld [vmem:[#allocation13 + $0x2c] sm:$0xf]
    %v2580 = vld [vmem:[#allocation13 + $0x30] sm:$0xf]
    %v2581 = vld [vmem:[#allocation13 + $0x34] sm:$0xf]
    %v2582 = vld [vmem:[#allocation13 + $0x38] sm:$0xf]
    %v2583 = vld [vmem:[#allocation13 + $0x3c] sm:$0xf]
    %v2584 = vld [vmem:[#allocation16 + $0xc] sm:$0x1]
    %v2585 = vpack.c.bf16 %v2567, %v2567
    %v2587 = vperm.slane %v2584, 0
    %v2605 = vunpack.c.l.b16 %v2568
    %v2606 = vunpack.c.l.b16 %v2569
    %v2607 = vunpack.c.l.b16 %v2570
    %v2608 = vunpack.c.l.b16 %v2571
    %v2609 = vunpack.c.l.b16 %v2572
    %v2610 = vunpack.c.l.b16 %v2573
    %v2611 = vunpack.c.l.b16 %v2574
    %v2612 = vunpack.c.l.b16 %v2575
    %v2613 = vunpack.c.l.b16 %v2576
    %v2614 = vunpack.c.l.b16 %v2577
    %v2615 = vunpack.c.l.b16 %v2578
    %v2616 = vunpack.c.l.b16 %v2579
    %v2617 = vunpack.c.l.b16 %v2580
    %v2618 = vunpack.c.l.b16 %v2581
    %v2619 = vunpack.c.l.b16 %v2582
    %v2620 = vunpack.c.l.b16 %v2583
    %v2621 = vpack.c.b16 %v2606, %v2605
    %v2622 = vpack.c.b16 %v2608, %v2607
    %v2623 = vpack.c.b16 %v2610, %v2609
    %v2624 = vpack.c.b16 %v2612, %v2611
    %v2625 = vpack.c.b16 %v2614, %v2613
    %v2626 = vpack.c.b16 %v2616, %v2615
    %v2627 = vpack.c.b16 %v2618, %v2617
    %v2628 = vpack.c.b16 %v2620, %v2619
    %2637 = vmatpush.bf16.msra.mxu0 %v2628
    %2638 = vmatpush.bf16.msra.mxu0 %v2627
    %2639 = vmatpush.bf16.msra.mxu0 %v2626
    %2640 = vmatpush.bf16.msra.mxu0 %v2625
    %2641 = vmatpush.bf16.msra.mxu0 %v2624
    %2642 = vmatpush.bf16.msra.mxu0 %v2623
    %2643 = vmatpush.bf16.msra.mxu0 %v2622
    %2644 = vmatpush.bf16.msra.mxu0 %v2621
    %2645 = vmatmul.bf16.gmra.mxu0 %v2585
    %v2646 = vpop.f32.mrf.mxu0
    %v2647 = vadd.f32 %v2587, %v2646
    %v2648 = vpop.f32.mrf.mxu0
    %2649 = vdwg.mxu0
    %v2650 = vmax.f32 %v2647, 0.0
    %v2651 = vld [vmem:[#allocation14] sm:$0xf]
    %v2652 = vld [vmem:[#allocation14 + $0x4] sm:$0xf]
    %v2653 = vld [vmem:[#allocation14 + $0x8] sm:$0xf]
    %v2654 = vld [vmem:[#allocation14 + $0xc] sm:$0xf]
    %v2655 = vld [vmem:[#allocation14 + $0x10] sm:$0xf]
    %v2656 = vld [vmem:[#allocation14 + $0x14] sm:$0xf]
    %v2657 = vld [vmem:[#allocation14 + $0x18] sm:$0xf]
    %v2658 = vld [vmem:[#allocation14 + $0x1c] sm:$0xf]
    %v2659 = vld [vmem:[#allocation14 + $0x20] sm:$0xf]
    %v2660 = vld [vmem:[#allocation14 + $0x24] sm:$0xf]
    %v2661 = vld [vmem:[#allocation14 + $0x28] sm:$0xf]
    %v2662 = vld [vmem:[#allocation14 + $0x2c] sm:$0xf]
    %v2663 = vld [vmem:[#allocation14 + $0x30] sm:$0xf]
    %v2664 = vld [vmem:[#allocation14 + $0x34] sm:$0xf]
    %v2665 = vld [vmem:[#allocation14 + $0x38] sm:$0xf]
    %v2666 = vld [vmem:[#allocation14 + $0x3c] sm:$0xf]
    %v2667 = vld [vmem:[#allocation16 + $0xd] sm:$0x1]
    %v2668 = vpack.c.bf16 %v2650, %v2650
    %v2670 = vperm.slane %v2667, 0
    %v2688 = vunpack.c.l.b16 %v2651
    %v2689 = vunpack.c.l.b16 %v2652
    %v2690 = vunpack.c.l.b16 %v2653
    %v2691 = vunpack.c.l.b16 %v2654
    %v2692 = vunpack.c.l.b16 %v2655
    %v2693 = vunpack.c.l.b16 %v2656
    %v2694 = vunpack.c.l.b16 %v2657
    %v2695 = vunpack.c.l.b16 %v2658
    %v2696 = vunpack.c.l.b16 %v2659
    %v2697 = vunpack.c.l.b16 %v2660
    %v2698 = vunpack.c.l.b16 %v2661
    %v2699 = vunpack.c.l.b16 %v2662
    %v2700 = vunpack.c.l.b16 %v2663
    %v2701 = vunpack.c.l.b16 %v2664
    %v2702 = vunpack.c.l.b16 %v2665
    %v2703 = vunpack.c.l.b16 %v2666
    %v2704 = vpack.c.b16 %v2689, %v2688
    %v2705 = vpack.c.b16 %v2691, %v2690
    %v2706 = vpack.c.b16 %v2693, %v2692
    %v2707 = vpack.c.b16 %v2695, %v2694
    %v2708 = vpack.c.b16 %v2697, %v2696
    %v2709 = vpack.c.b16 %v2699, %v2698
    %v2710 = vpack.c.b16 %v2701, %v2700
    %v2711 = vpack.c.b16 %v2703, %v2702
    %2720 = vmatpush.bf16.msra.mxu0 %v2711
    %2721 = vmatpush.bf16.msra.mxu0 %v2710
    %2722 = vmatpush.bf16.msra.mxu0 %v2709
    %2723 = vmatpush.bf16.msra.mxu0 %v2708
    %2724 = vmatpush.bf16.msra.mxu0 %v2707
    %2725 = vmatpush.bf16.msra.mxu0 %v2706
    %2726 = vmatpush.bf16.msra.mxu0 %v2705
    %2727 = vmatpush.bf16.msra.mxu0 %v2704
    %2728 = vmatmul.bf16.gmra.mxu0 %v2668
    %v2729 = vpop.f32.mrf.mxu0
    %v2730 = vadd.f32 %v2670, %v2729
    %v2731 = vpop.f32.mrf.mxu0
    %2732 = vdwg.mxu0
    %2733 = vst [vmem:[#allocation17] sm:$0xff] %v2730
    // Predicated region
    $region74: #{mlp_forward.1} parent=1 // pred_check
      _
    $region75: #{mlp_forward.1} parent=1 // pred_check_branch
      %2735 = sbr.rel (0) target = $region77
    $region76: #{mlp_forward.1} parent=1 // pred_region
      %2737 = vsyncadd [#allocation4], 0
      %s2739 = sshll.u32 [#allocation17], 4
      %s2740 = int_to_ptr.vmem [resolvable:$true] %s2739
      %s2741 = sshll.u32 %s9, 4
      %s2742 = int_to_ptr.hbm [resolvable:$true] %s2741
      %2744 = dma.vmem_to_hbm [thread:$0]  %s2740, 128, %s2742, [#allocation4]
    $region77: #{mlp_forward.1} parent=1 // pred_fallthru
      _
    // Predicated region
    $region78: #{mlp_forward.1} parent=1 // pred_check
      _
    $region79: #{mlp_forward.1} parent=1 // pred_check_branch
      %2746 = sbr.rel (0) target = $region81
    $region80: #{mlp_forward.1} parent=1 // pred_region
      %2748 = dma.done [#allocation4], 128
    $region81: #{mlp_forward.1} parent=1 // pred_fallthru
      _
    %2749 = vsyncpa [#allocation3], 1
    %2750 = vsyncpa [#allocation6], 1
    %2751 = vsyncpa [#allocation9], 1
    %2752 = vsyncpa [#allocation12], 1
    %2753 = vsyncpa [#allocation15], 1
    %2754 = vsyncpa [#allocation4], 1

</llo_original>
